<compile_context>
chip_gen: v7x
topology: tpu7x:2x2x1
jax: 0.10.0
libtpu: 0.0.40
codegen_flags: <defaults>
</compile_context>

<pallas_src>
import functools
import math

import jax
import jax.numpy as jnp
from jax.experimental import pallas as pl
from jax.experimental.pallas import tpu as pltpu

LN_EPS = 1e-5  # PyTorch LayerNorm default


# ----------------------------------------------------------------------------
# Fused encoder-block kernel: one grid step == one batch element.
# ----------------------------------------------------------------------------
def encode_block_kernel(x_ref,
                        wqkv_ref, bqkv_ref, wo_ref, bo_ref,
                        w1_ref, b1_ref, w2_ref, b2_ref,
                        g1_ref, be1_ref, g2_ref, be2_ref,
                        o_ref, *, num_heads):
    f32, bf16 = jnp.float32, jnp.bfloat16
    x = x_ref[...].astype(f32)            # (T, D)
    T, D = x.shape
    H = num_heads
    hd = D // H
    scale = 1.0 / math.sqrt(hd)

    # Hoist all weight loads once (kernel body calls mha() twice).
    wqkv = wqkv_ref[...]                  # (D, 3D)  bf16
    bqkv = bqkv_ref[...]                  # (1, 3D)  f32
    wo = wo_ref[...]                      # (D, D)   bf16
    bo = bo_ref[...]                      # (1, D)   f32
    w1 = w1_ref[...]                      # (D, 4D)  bf16
    b1 = b1_ref[...]                      # (1, 4D)  f32
    w2 = w2_ref[...]                      # (4D, D)  bf16
    b2 = b2_ref[...]                      # (1, D)   f32
    g1, bt1 = g1_ref[...], be1_ref[...]   # (1, D)   f32
    g2, bt2 = g2_ref[...], be2_ref[...]

    def layernorm(y, gamma, beta):        # f32 in / f32 out
        mean = jnp.mean(y, axis=-1, keepdims=True)
        var = jnp.mean(jnp.square(y - mean), axis=-1, keepdims=True)
        return (y - mean) * jax.lax.rsqrt(var + LN_EPS) * gamma + beta

    # A @ B.T without materializing the transpose (standard "NT" matmul).
    nt_dims = (((1,), (1,)), ((), ()))

    def mha(inp):                         # f32 (T, D) -> f32 (T, D)
        # Single full-width fused QKV matmul (bf16 operands, f32 accumulate).
        qkv = jnp.dot(inp.astype(bf16), wqkv,
                      preferred_element_type=f32) + bqkv              # (T, 3D)
        q = (qkv[:, 0 * D:1 * D] * scale).astype(bf16)  # scale folded into Q
        k = qkv[:, 1 * D:2 * D].astype(bf16)
        v = qkv[:, 2 * D:3 * D].astype(bf16)

        ctx_heads = []
        for h in range(H):                # static unroll over heads
            lo, hi = h * hd, (h + 1) * hd
            qh = q[:, lo:hi]              # (T, hd) bf16
            kh = k[:, lo:hi]
            vh = v[:, lo:hi]
            s = jax.lax.dot_general(qh, kh, nt_dims,
                                    preferred_element_type=f32)       # (T, T)
            s = s - jnp.max(s, axis=-1, keepdims=True)
            p = jnp.exp(s)
            p = p / jnp.sum(p, axis=-1, keepdims=True)  # exact softmax (f32)
            ctx_heads.append(
                jnp.dot(p.astype(bf16), vh,
                        preferred_element_type=f32).astype(bf16))     # (T, hd)

        ctx = jnp.concatenate(ctx_heads, axis=-1)                     # (T, D)
        # Fused output projection: one K=D MXU matmul instead of H tiny ones.
        return jnp.dot(ctx, wo, preferred_element_type=f32) + bo      # (T, D)

    def ff(inp):                          # f32 (T, D) -> f32 (T, D)
        h = jnp.dot(inp.astype(bf16), w1, preferred_element_type=f32) + b1
        h = jnp.maximum(h, 0.0)           # ReLU (f32)
        return jnp.dot(h.astype(bf16), w2, preferred_element_type=f32) + b2

    # Dropout layers run as identity (eval mode).
    a1 = mha(x)
    x1 = layernorm(a1 + x, g1, bt1)
    f1 = ff(x1)
    x2 = layernorm(f1 + x1, g2, bt2)
    a2 = mha(x2)                          # same attention params (shared module)
    out = layernorm(a2 + x2, g2, bt2)     # l2 reused, as in the reference
    o_ref[...] = out.astype(o_ref.dtype)


# ----------------------------------------------------------------------------
# Wrapper: fuse QKV weights, cast matmul weights to bf16 (cheap XLA prep),
# single pallas_call for the whole block.
# ----------------------------------------------------------------------------
def encode_forward(x, params, num_heads):
    B, T, D = x.shape
    bf16 = jnp.bfloat16
    attn = params["attn"]

    # Fused (D, 3D) QKV weight / (1, 3D) bias; bf16 weights, f32 biases.
    wqkv = jnp.concatenate([attn["wq"], attn["wk"], attn["wv"]],
                           axis=1).astype(bf16)
    bqkv = jnp.concatenate([attn["bq"], attn["bk"], attn["bv"]], axis=1)
    wo = attn["wo"].astype(bf16)
    bo = attn["bo"]
    ffp = params["ff"]
    w1, b1 = ffp["w1"].astype(bf16), ffp["b1"]
    w2, b2 = ffp["w2"].astype(bf16), ffp["b2"]

    operands = (x,
                wqkv, bqkv, wo, bo,
                w1, b1, w2, b2,
                params["l1_g"], params["l1_b"],
                params["l2_g"], params["l2_b"])

    # Squeezed leading batch dim -> kernel sees clean (T, D) refs.
    # NOTE: demo D=32 means the output tile is not lane-dense; real models
    # should pick D (and per-tile T) as multiples of 128.
    act_spec = pl.BlockSpec((None, T, D), lambda b: (b, 0, 0))

    def rep_spec(a):
        zeros = (0,) * a.ndim
        return pl.BlockSpec(a.shape, lambda b, _z=zeros: _z)

    in_specs = [act_spec] + [rep_spec(a) for a in operands[1:]]

    return pl.pallas_call(
        functools.partial(encode_block_kernel, num_heads=num_heads),
        out_shape=jax.ShapeDtypeStruct((B, T, D), x.dtype),
        grid=(B,),
        in_specs=in_specs,
        out_specs=act_spec,
        compiler_params=pltpu.CompilerParams(
            dimension_semantics=("parallel",),
            # 32 MiB is safe on all parts; raise toward 64-100 MiB on
            # v5e/v6e (keep <= ~48 MiB on v7x) when scaling T / n_embd.
            vmem_limit_bytes=32 * 1024 * 1024),
    )(*operands)


# ----------------------------------------------------------------------------
# Deterministic parameter construction
# ----------------------------------------------------------------------------
def init_params(key, n_embd):
    D = n_embd
    Hid = 4 * n_embd
    ks = jax.random.split(key, 10)

    def w(k, shape):
        return (0.02 * jax.random.normal(k, shape)).astype(jnp.float32)

    attn = {
        "wq": w(ks[0], (D, D)), "bq": w(ks[1], (1, D)),
        "wk": w(ks[2], (D, D)), "bk": w(ks[3], (1, D)),
        "wv": w(ks[4], (D, D)), "bv": w(ks[5], (1, D)),
        "wo": w(ks[6], (D, D)), "bo": w(ks[7], (1, D)),
    }
    ffp = {
        "w1": w(ks[8], (D, Hid)), "b1": jnp.zeros((1, Hid), jnp.float32),
        "w2": w(ks[9], (Hid, D)), "b2": jnp.zeros((1, D), jnp.float32),
    }
    return {
        "attn": attn,
        "ff": ffp,
        "l1_g": jnp.ones((1, D), jnp.float32),
        "l1_b": jnp.zeros((1, D), jnp.float32),
        "l2_g": jnp.ones((1, D), jnp.float32),
        "l2_b": jnp.zeros((1, D), jnp.float32),
    }


if __name__ == "__main__":
    B, T, D, NUM_HEADS = 2, 8, 32, 4  # max_seq_length = T = 8

    key = jax.random.PRNGKey(0)
    k_x, k_p = jax.random.split(key)
    x = jax.random.normal(k_x, (B, T, D), dtype=jnp.float32)
    params = init_params(k_p, D)

    fwd = jax.jit(functools.partial(encode_forward, num_heads=NUM_HEADS))
    out = jax.block_until_ready(fwd(x, params))
    assert out.shape == (B, T, D)
    print("KERNEL_OK")
</pallas_src>

<mosaic_0001>
module attributes {stable_mosaic.version = 11 : i64} {
  func.func @encode_block_kernel(%arg0: i32, %arg1: memref<1x8x32xf32, #tpu.memory_space<vmem>>, %arg2: memref<32x96xbf16, #tpu.memory_space<vmem>>, %arg3: memref<1x96xf32, #tpu.memory_space<vmem>>, %arg4: memref<32x32xbf16, #tpu.memory_space<vmem>>, %arg5: memref<1x32xf32, #tpu.memory_space<vmem>>, %arg6: memref<32x128xbf16, #tpu.memory_space<vmem>>, %arg7: memref<1x128xf32, #tpu.memory_space<vmem>>, %arg8: memref<128x32xbf16, #tpu.memory_space<vmem>>, %arg9: memref<1x32xf32, #tpu.memory_space<vmem>>, %arg10: memref<1x32xf32, #tpu.memory_space<vmem>>, %arg11: memref<1x32xf32, #tpu.memory_space<vmem>>, %arg12: memref<1x32xf32, #tpu.memory_space<vmem>>, %arg13: memref<1x32xf32, #tpu.memory_space<vmem>>, %arg14: memref<1x8x32xf32, #tpu.memory_space<vmem>>) attributes {dimension_semantics = [#tpu.dimension_semantics<parallel>], iteration_bounds = array<i64: 2>, scalar_prefetch = 0 : i64, scratch_operands = 0 : i64, tpu.core_type = #tpu.core_type<tc>, window_params = [{transform_indices = @transform_0, window_bounds = array<i64: 1, 8, 32>}, {pipeline_mode = #tpu.pipeline_mode<synchronous>, transform_indices = @transform_1, window_bounds = array<i64: 32, 96>}, {pipeline_mode = #tpu.pipeline_mode<synchronous>, transform_indices = @transform_2, window_bounds = array<i64: 1, 96>}, {pipeline_mode = #tpu.pipeline_mode<synchronous>, transform_indices = @transform_3, window_bounds = array<i64: 32, 32>}, {pipeline_mode = #tpu.pipeline_mode<synchronous>, transform_indices = @transform_4, window_bounds = array<i64: 1, 32>}, {pipeline_mode = #tpu.pipeline_mode<synchronous>, transform_indices = @transform_5, window_bounds = array<i64: 32, 128>}, {pipeline_mode = #tpu.pipeline_mode<synchronous>, transform_indices = @transform_6, window_bounds = array<i64: 1, 128>}, {pipeline_mode = #tpu.pipeline_mode<synchronous>, transform_indices = @transform_7, window_bounds = array<i64: 128, 32>}, {pipeline_mode = #tpu.pipeline_mode<synchronous>, transform_indices = @transform_8, window_bounds = array<i64: 1, 32>}, {pipeline_mode = #tpu.pipeline_mode<synchronous>, transform_indices = @transform_9, window_bounds = array<i64: 1, 32>}, {pipeline_mode = #tpu.pipeline_mode<synchronous>, transform_indices = @transform_10, window_bounds = array<i64: 1, 32>}, {pipeline_mode = #tpu.pipeline_mode<synchronous>, transform_indices = @transform_11, window_bounds = array<i64: 1, 32>}, {pipeline_mode = #tpu.pipeline_mode<synchronous>, transform_indices = @transform_12, window_bounds = array<i64: 1, 32>}, {transform_indices = @transform_13, window_bounds = array<i64: 1, 8, 32>}]} {
    %c0 = arith.constant 0 : index
    %c0_0 = arith.constant 0 : index
    %c0_1 = arith.constant 0 : index
    %0 = vector.load %arg1[%c0, %c0_0, %c0_1] : memref<1x8x32xf32, #tpu.memory_space<vmem>>, vector<1x8x32xf32>
    %1 = vector.shape_cast %0 : vector<1x8x32xf32> to vector<8x32xf32>
    %c0_2 = arith.constant 0 : index
    %c0_3 = arith.constant 0 : index
    %2 = vector.load %arg2[%c0_2, %c0_3] : memref<32x96xbf16, #tpu.memory_space<vmem>>, vector<32x96xbf16>
    %c0_4 = arith.constant 0 : index
    %c0_5 = arith.constant 0 : index
    %3 = vector.load %arg3[%c0_4, %c0_5] : memref<1x96xf32, #tpu.memory_space<vmem>>, vector<1x96xf32>
    %c0_6 = arith.constant 0 : index
    %c0_7 = arith.constant 0 : index
    %4 = vector.load %arg4[%c0_6, %c0_7] : memref<32x32xbf16, #tpu.memory_space<vmem>>, vector<32x32xbf16>
    %c0_8 = arith.constant 0 : index
    %c0_9 = arith.constant 0 : index
    %5 = vector.load %arg5[%c0_8, %c0_9] : memref<1x32xf32, #tpu.memory_space<vmem>>, vector<1x32xf32>
    %c0_10 = arith.constant 0 : index
    %c0_11 = arith.constant 0 : index
    %6 = vector.load %arg6[%c0_10, %c0_11] : memref<32x128xbf16, #tpu.memory_space<vmem>>, vector<32x128xbf16>
    %c0_12 = arith.constant 0 : index
    %c0_13 = arith.constant 0 : index
    %7 = vector.load %arg7[%c0_12, %c0_13] : memref<1x128xf32, #tpu.memory_space<vmem>>, vector<1x128xf32>
    %c0_14 = arith.constant 0 : index
    %c0_15 = arith.constant 0 : index
    %8 = vector.load %arg8[%c0_14, %c0_15] : memref<128x32xbf16, #tpu.memory_space<vmem>>, vector<128x32xbf16>
    %c0_16 = arith.constant 0 : index
    %c0_17 = arith.constant 0 : index
    %9 = vector.load %arg9[%c0_16, %c0_17] : memref<1x32xf32, #tpu.memory_space<vmem>>, vector<1x32xf32>
    %c0_18 = arith.constant 0 : index
    %c0_19 = arith.constant 0 : index
    %10 = vector.load %arg10[%c0_18, %c0_19] : memref<1x32xf32, #tpu.memory_space<vmem>>, vector<1x32xf32>
    %c0_20 = arith.constant 0 : index
    %c0_21 = arith.constant 0 : index
    %11 = vector.load %arg11[%c0_20, %c0_21] : memref<1x32xf32, #tpu.memory_space<vmem>>, vector<1x32xf32>
    %c0_22 = arith.constant 0 : index
    %c0_23 = arith.constant 0 : index
    %12 = vector.load %arg12[%c0_22, %c0_23] : memref<1x32xf32, #tpu.memory_space<vmem>>, vector<1x32xf32>
    %c0_24 = arith.constant 0 : index
    %c0_25 = arith.constant 0 : index
    %13 = vector.load %arg13[%c0_24, %c0_25] : memref<1x32xf32, #tpu.memory_space<vmem>>, vector<1x32xf32>
    %14 = arith.truncf %1 : vector<8x32xf32> to vector<8x32xbf16>
    %cst = arith.constant dense<0.000000e+00> : vector<8x96xf32>
    %15 = tpu.matmul %14, %2, %cst {dimension_numbers = #tpu.dot_dimension_numbers<[1], [0], [0], [1], [0, 0, 1, 1], [], []>} : vector<8x32xbf16>, vector<32x96xbf16>, vector<8x96xf32> -> vector<8x96xf32>
    %16 = vector.broadcast %3 : vector<1x96xf32> to vector<8x96xf32>
    %17 = arith.addf %15, %16 : vector<8x96xf32>
    %18 = vector.extract_strided_slice %17 {offsets = [0, 0], sizes = [8, 32], strides = [1, 1]} : vector<8x96xf32> to vector<8x32xf32>
    %cst_26 = arith.constant 0.353553385 : f32
    %19 = vector.broadcast %cst_26 : f32 to vector<8x32xf32>
    %20 = arith.mulf %18, %19 : vector<8x32xf32>
    %21 = arith.truncf %20 : vector<8x32xf32> to vector<8x32xbf16>
    %22 = vector.extract_strided_slice %17 {offsets = [0, 32], sizes = [8, 32], strides = [1, 1]} : vector<8x96xf32> to vector<8x32xf32>
    %23 = arith.truncf %22 : vector<8x32xf32> to vector<8x32xbf16>
    %24 = vector.extract_strided_slice %17 {offsets = [0, 64], sizes = [8, 32], strides = [1, 1]} : vector<8x96xf32> to vector<8x32xf32>
    %25 = arith.truncf %24 : vector<8x32xf32> to vector<8x32xbf16>
    %26 = vector.extract_strided_slice %21 {offsets = [0, 0], sizes = [8, 8], strides = [1, 1]} : vector<8x32xbf16> to vector<8x8xbf16>
    %27 = vector.extract_strided_slice %23 {offsets = [0, 0], sizes = [8, 8], strides = [1, 1]} : vector<8x32xbf16> to vector<8x8xbf16>
    %28 = vector.extract_strided_slice %25 {offsets = [0, 0], sizes = [8, 8], strides = [1, 1]} : vector<8x32xbf16> to vector<8x8xbf16>
    %cst_27 = arith.constant dense<0.000000e+00> : vector<8x8xf32>
    %29 = tpu.matmul %26, %27, %cst_27 {dimension_numbers = #tpu.dot_dimension_numbers<[1], [1], [0], [0], [0, 0, 1, 0], [], []>} : vector<8x8xbf16>, vector<8x8xbf16>, vector<8x8xf32> -> vector<8x8xf32>
    %cst_28 = arith.constant dense<0xFF800000> : vector<8xf32>
    %30 = vector.multi_reduction <maximumf>, %29, %cst_28 [1] : vector<8x8xf32> to vector<8xf32>
    %31 = vector.shape_cast %30 : vector<8xf32> to vector<8x1xf32>
    %32 = vector.broadcast %31 : vector<8x1xf32> to vector<8x8xf32>
    %33 = arith.subf %29, %32 : vector<8x8xf32>
    %34 = math.exp %33 : vector<8x8xf32>
    %cst_29 = arith.constant dense<0.000000e+00> : vector<8xf32>
    %35 = vector.multi_reduction <add>, %34, %cst_29 [1] : vector<8x8xf32> to vector<8xf32>
    %36 = vector.shape_cast %35 : vector<8xf32> to vector<8x1xf32>
    %37 = vector.broadcast %36 : vector<8x1xf32> to vector<8x8xf32>
    %38 = arith.divf %34, %37 : vector<8x8xf32>
    %39 = arith.truncf %38 : vector<8x8xf32> to vector<8x8xbf16>
    %cst_30 = arith.constant dense<0.000000e+00> : vector<8x8xf32>
    %40 = tpu.matmul %39, %28, %cst_30 {dimension_numbers = #tpu.dot_dimension_numbers<[1], [0], [0], [1], [0, 0, 1, 1], [], []>} : vector<8x8xbf16>, vector<8x8xbf16>, vector<8x8xf32> -> vector<8x8xf32>
    %41 = arith.truncf %40 : vector<8x8xf32> to vector<8x8xbf16>
    %42 = vector.extract_strided_slice %21 {offsets = [0, 8], sizes = [8, 8], strides = [1, 1]} : vector<8x32xbf16> to vector<8x8xbf16>
    %43 = vector.extract_strided_slice %23 {offsets = [0, 8], sizes = [8, 8], strides = [1, 1]} : vector<8x32xbf16> to vector<8x8xbf16>
    %44 = vector.extract_strided_slice %25 {offsets = [0, 8], sizes = [8, 8], strides = [1, 1]} : vector<8x32xbf16> to vector<8x8xbf16>
    %cst_31 = arith.constant dense<0.000000e+00> : vector<8x8xf32>
    %45 = tpu.matmul %42, %43, %cst_31 {dimension_numbers = #tpu.dot_dimension_numbers<[1], [1], [0], [0], [0, 0, 1, 0], [], []>} : vector<8x8xbf16>, vector<8x8xbf16>, vector<8x8xf32> -> vector<8x8xf32>
    %cst_32 = arith.constant dense<0xFF800000> : vector<8xf32>
    %46 = vector.multi_reduction <maximumf>, %45, %cst_32 [1] : vector<8x8xf32> to vector<8xf32>
    %47 = vector.shape_cast %46 : vector<8xf32> to vector<8x1xf32>
    %48 = vector.broadcast %47 : vector<8x1xf32> to vector<8x8xf32>
    %49 = arith.subf %45, %48 : vector<8x8xf32>
    %50 = math.exp %49 : vector<8x8xf32>
    %cst_33 = arith.constant dense<0.000000e+00> : vector<8xf32>
    %51 = vector.multi_reduction <add>, %50, %cst_33 [1] : vector<8x8xf32> to vector<8xf32>
    %52 = vector.shape_cast %51 : vector<8xf32> to vector<8x1xf32>
    %53 = vector.broadcast %52 : vector<8x1xf32> to vector<8x8xf32>
    %54 = arith.divf %50, %53 : vector<8x8xf32>
    %55 = arith.truncf %54 : vector<8x8xf32> to vector<8x8xbf16>
    %cst_34 = arith.constant dense<0.000000e+00> : vector<8x8xf32>
    %56 = tpu.matmul %55, %44, %cst_34 {dimension_numbers = #tpu.dot_dimension_numbers<[1], [0], [0], [1], [0, 0, 1, 1], [], []>} : vector<8x8xbf16>, vector<8x8xbf16>, vector<8x8xf32> -> vector<8x8xf32>
    %57 = arith.truncf %56 : vector<8x8xf32> to vector<8x8xbf16>
    %58 = vector.extract_strided_slice %21 {offsets = [0, 16], sizes = [8, 8], strides = [1, 1]} : vector<8x32xbf16> to vector<8x8xbf16>
    %59 = vector.extract_strided_slice %23 {offsets = [0, 16], sizes = [8, 8], strides = [1, 1]} : vector<8x32xbf16> to vector<8x8xbf16>
    %60 = vector.extract_strided_slice %25 {offsets = [0, 16], sizes = [8, 8], strides = [1, 1]} : vector<8x32xbf16> to vector<8x8xbf16>
    %cst_35 = arith.constant dense<0.000000e+00> : vector<8x8xf32>
    %61 = tpu.matmul %58, %59, %cst_35 {dimension_numbers = #tpu.dot_dimension_numbers<[1], [1], [0], [0], [0, 0, 1, 0], [], []>} : vector<8x8xbf16>, vector<8x8xbf16>, vector<8x8xf32> -> vector<8x8xf32>
    %cst_36 = arith.constant dense<0xFF800000> : vector<8xf32>
    %62 = vector.multi_reduction <maximumf>, %61, %cst_36 [1] : vector<8x8xf32> to vector<8xf32>
    %63 = vector.shape_cast %62 : vector<8xf32> to vector<8x1xf32>
    %64 = vector.broadcast %63 : vector<8x1xf32> to vector<8x8xf32>
    %65 = arith.subf %61, %64 : vector<8x8xf32>
    %66 = math.exp %65 : vector<8x8xf32>
    %cst_37 = arith.constant dense<0.000000e+00> : vector<8xf32>
    %67 = vector.multi_reduction <add>, %66, %cst_37 [1] : vector<8x8xf32> to vector<8xf32>
    %68 = vector.shape_cast %67 : vector<8xf32> to vector<8x1xf32>
    %69 = vector.broadcast %68 : vector<8x1xf32> to vector<8x8xf32>
    %70 = arith.divf %66, %69 : vector<8x8xf32>
    %71 = arith.truncf %70 : vector<8x8xf32> to vector<8x8xbf16>
    %cst_38 = arith.constant dense<0.000000e+00> : vector<8x8xf32>
    %72 = tpu.matmul %71, %60, %cst_38 {dimension_numbers = #tpu.dot_dimension_numbers<[1], [0], [0], [1], [0, 0, 1, 1], [], []>} : vector<8x8xbf16>, vector<8x8xbf16>, vector<8x8xf32> -> vector<8x8xf32>
    %73 = arith.truncf %72 : vector<8x8xf32> to vector<8x8xbf16>
    %74 = vector.extract_strided_slice %21 {offsets = [0, 24], sizes = [8, 8], strides = [1, 1]} : vector<8x32xbf16> to vector<8x8xbf16>
    %75 = vector.extract_strided_slice %23 {offsets = [0, 24], sizes = [8, 8], strides = [1, 1]} : vector<8x32xbf16> to vector<8x8xbf16>
    %76 = vector.extract_strided_slice %25 {offsets = [0, 24], sizes = [8, 8], strides = [1, 1]} : vector<8x32xbf16> to vector<8x8xbf16>
    %cst_39 = arith.constant dense<0.000000e+00> : vector<8x8xf32>
    %77 = tpu.matmul %74, %75, %cst_39 {dimension_numbers = #tpu.dot_dimension_numbers<[1], [1], [0], [0], [0, 0, 1, 0], [], []>} : vector<8x8xbf16>, vector<8x8xbf16>, vector<8x8xf32> -> vector<8x8xf32>
    %cst_40 = arith.constant dense<0xFF800000> : vector<8xf32>
    %78 = vector.multi_reduction <maximumf>, %77, %cst_40 [1] : vector<8x8xf32> to vector<8xf32>
    %79 = vector.shape_cast %78 : vector<8xf32> to vector<8x1xf32>
    %80 = vector.broadcast %79 : vector<8x1xf32> to vector<8x8xf32>
    %81 = arith.subf %77, %80 : vector<8x8xf32>
    %82 = math.exp %81 : vector<8x8xf32>
    %cst_41 = arith.constant dense<0.000000e+00> : vector<8xf32>
    %83 = vector.multi_reduction <add>, %82, %cst_41 [1] : vector<8x8xf32> to vector<8xf32>
    %84 = vector.shape_cast %83 : vector<8xf32> to vector<8x1xf32>
    %85 = vector.broadcast %84 : vector<8x1xf32> to vector<8x8xf32>
    %86 = arith.divf %82, %85 : vector<8x8xf32>
    %87 = arith.truncf %86 : vector<8x8xf32> to vector<8x8xbf16>
    %cst_42 = arith.constant dense<0.000000e+00> : vector<8x8xf32>
    %88 = tpu.matmul %87, %76, %cst_42 {dimension_numbers = #tpu.dot_dimension_numbers<[1], [0], [0], [1], [0, 0, 1, 1], [], []>} : vector<8x8xbf16>, vector<8x8xbf16>, vector<8x8xf32> -> vector<8x8xf32>
    %89 = arith.truncf %88 : vector<8x8xf32> to vector<8x8xbf16>
    %90 = tpu.concatenate %41, %57, %73, %89 in 1 : vector<8x8xbf16>, vector<8x8xbf16>, vector<8x8xbf16>, vector<8x8xbf16> -> vector<8x32xbf16>
    %cst_43 = arith.constant dense<0.000000e+00> : vector<8x32xf32>
    %91 = tpu.matmul %90, %4, %cst_43 {dimension_numbers = #tpu.dot_dimension_numbers<[1], [0], [0], [1], [0, 0, 1, 1], [], []>} : vector<8x32xbf16>, vector<32x32xbf16>, vector<8x32xf32> -> vector<8x32xf32>
    %92 = vector.broadcast %5 : vector<1x32xf32> to vector<8x32xf32>
    %93 = arith.addf %91, %92 : vector<8x32xf32>
    %94 = arith.addf %93, %1 : vector<8x32xf32>
    %cst_44 = arith.constant dense<0.000000e+00> : vector<8xf32>
    %95 = vector.multi_reduction <add>, %94, %cst_44 [1] : vector<8x32xf32> to vector<8xf32>
    %96 = vector.shape_cast %95 : vector<8xf32> to vector<8x1xf32>
    %cst_45 = arith.constant 3.200000e+01 : f32
    %97 = vector.broadcast %cst_45 : f32 to vector<8x1xf32>
    %98 = arith.divf %96, %97 : vector<8x1xf32>
    %99 = vector.broadcast %98 : vector<8x1xf32> to vector<8x32xf32>
    %100 = arith.subf %94, %99 : vector<8x32xf32>
    %101 = arith.mulf %100, %100 : vector<8x32xf32>
    %cst_46 = arith.constant dense<0.000000e+00> : vector<8xf32>
    %102 = vector.multi_reduction <add>, %101, %cst_46 [1] : vector<8x32xf32> to vector<8xf32>
    %103 = vector.shape_cast %102 : vector<8xf32> to vector<8x1xf32>
    %cst_47 = arith.constant 3.200000e+01 : f32
    %104 = vector.broadcast %cst_47 : f32 to vector<8x1xf32>
    %105 = arith.divf %103, %104 : vector<8x1xf32>
    %106 = vector.broadcast %98 : vector<8x1xf32> to vector<8x32xf32>
    %107 = arith.subf %94, %106 : vector<8x32xf32>
    %cst_48 = arith.constant 9.99999974E-6 : f32
    %108 = vector.broadcast %cst_48 : f32 to vector<8x1xf32>
    %109 = arith.addf %105, %108 : vector<8x1xf32>
    %110 = math.rsqrt %109 : vector<8x1xf32>
    %111 = vector.broadcast %110 : vector<8x1xf32> to vector<8x32xf32>
    %112 = arith.mulf %107, %111 : vector<8x32xf32>
    %113 = vector.broadcast %10 : vector<1x32xf32> to vector<8x32xf32>
    %114 = arith.mulf %112, %113 : vector<8x32xf32>
    %115 = vector.broadcast %11 : vector<1x32xf32> to vector<8x32xf32>
    %116 = arith.addf %114, %115 : vector<8x32xf32>
    %117 = arith.truncf %116 : vector<8x32xf32> to vector<8x32xbf16>
    %cst_49 = arith.constant dense<0.000000e+00> : vector<8x128xf32>
    %118 = tpu.matmul %117, %6, %cst_49 {dimension_numbers = #tpu.dot_dimension_numbers<[1], [0], [0], [1], [0, 0, 1, 1], [], []>} : vector<8x32xbf16>, vector<32x128xbf16>, vector<8x128xf32> -> vector<8x128xf32>
    %119 = vector.broadcast %7 : vector<1x128xf32> to vector<8x128xf32>
    %120 = arith.addf %118, %119 : vector<8x128xf32>
    %cst_50 = arith.constant 0.000000e+00 : f32
    %121 = vector.broadcast %cst_50 : f32 to vector<8x128xf32>
    %122 = arith.maximumf %120, %121 : vector<8x128xf32>
    %123 = arith.truncf %122 : vector<8x128xf32> to vector<8x128xbf16>
    %cst_51 = arith.constant dense<0.000000e+00> : vector<8x32xf32>
    %124 = tpu.matmul %123, %8, %cst_51 {dimension_numbers = #tpu.dot_dimension_numbers<[1], [0], [0], [1], [0, 0, 1, 1], [], []>} : vector<8x128xbf16>, vector<128x32xbf16>, vector<8x32xf32> -> vector<8x32xf32>
    %125 = vector.broadcast %9 : vector<1x32xf32> to vector<8x32xf32>
    %126 = arith.addf %124, %125 : vector<8x32xf32>
    %127 = arith.addf %126, %116 : vector<8x32xf32>
    %cst_52 = arith.constant dense<0.000000e+00> : vector<8xf32>
    %128 = vector.multi_reduction <add>, %127, %cst_52 [1] : vector<8x32xf32> to vector<8xf32>
    %129 = vector.shape_cast %128 : vector<8xf32> to vector<8x1xf32>
    %cst_53 = arith.constant 3.200000e+01 : f32
    %130 = vector.broadcast %cst_53 : f32 to vector<8x1xf32>
    %131 = arith.divf %129, %130 : vector<8x1xf32>
    %132 = vector.broadcast %131 : vector<8x1xf32> to vector<8x32xf32>
    %133 = arith.subf %127, %132 : vector<8x32xf32>
    %134 = arith.mulf %133, %133 : vector<8x32xf32>
    %cst_54 = arith.constant dense<0.000000e+00> : vector<8xf32>
    %135 = vector.multi_reduction <add>, %134, %cst_54 [1] : vector<8x32xf32> to vector<8xf32>
    %136 = vector.shape_cast %135 : vector<8xf32> to vector<8x1xf32>
    %cst_55 = arith.constant 3.200000e+01 : f32
    %137 = vector.broadcast %cst_55 : f32 to vector<8x1xf32>
    %138 = arith.divf %136, %137 : vector<8x1xf32>
    %139 = vector.broadcast %131 : vector<8x1xf32> to vector<8x32xf32>
    %140 = arith.subf %127, %139 : vector<8x32xf32>
    %cst_56 = arith.constant 9.99999974E-6 : f32
    %141 = vector.broadcast %cst_56 : f32 to vector<8x1xf32>
    %142 = arith.addf %138, %141 : vector<8x1xf32>
    %143 = math.rsqrt %142 : vector<8x1xf32>
    %144 = vector.broadcast %143 : vector<8x1xf32> to vector<8x32xf32>
    %145 = arith.mulf %140, %144 : vector<8x32xf32>
    %146 = vector.broadcast %12 : vector<1x32xf32> to vector<8x32xf32>
    %147 = arith.mulf %145, %146 : vector<8x32xf32>
    %148 = vector.broadcast %13 : vector<1x32xf32> to vector<8x32xf32>
    %149 = arith.addf %147, %148 : vector<8x32xf32>
    %150 = arith.truncf %149 : vector<8x32xf32> to vector<8x32xbf16>
    %cst_57 = arith.constant dense<0.000000e+00> : vector<8x96xf32>
    %151 = tpu.matmul %150, %2, %cst_57 {dimension_numbers = #tpu.dot_dimension_numbers<[1], [0], [0], [1], [0, 0, 1, 1], [], []>} : vector<8x32xbf16>, vector<32x96xbf16>, vector<8x96xf32> -> vector<8x96xf32>
    %152 = vector.broadcast %3 : vector<1x96xf32> to vector<8x96xf32>
    %153 = arith.addf %151, %152 : vector<8x96xf32>
    %154 = vector.extract_strided_slice %153 {offsets = [0, 0], sizes = [8, 32], strides = [1, 1]} : vector<8x96xf32> to vector<8x32xf32>
    %cst_58 = arith.constant 0.353553385 : f32
    %155 = vector.broadcast %cst_58 : f32 to vector<8x32xf32>
    %156 = arith.mulf %154, %155 : vector<8x32xf32>
    %157 = arith.truncf %156 : vector<8x32xf32> to vector<8x32xbf16>
    %158 = vector.extract_strided_slice %153 {offsets = [0, 32], sizes = [8, 32], strides = [1, 1]} : vector<8x96xf32> to vector<8x32xf32>
    %159 = arith.truncf %158 : vector<8x32xf32> to vector<8x32xbf16>
    %160 = vector.extract_strided_slice %153 {offsets = [0, 64], sizes = [8, 32], strides = [1, 1]} : vector<8x96xf32> to vector<8x32xf32>
    %161 = arith.truncf %160 : vector<8x32xf32> to vector<8x32xbf16>
    %162 = vector.extract_strided_slice %157 {offsets = [0, 0], sizes = [8, 8], strides = [1, 1]} : vector<8x32xbf16> to vector<8x8xbf16>
    %163 = vector.extract_strided_slice %159 {offsets = [0, 0], sizes = [8, 8], strides = [1, 1]} : vector<8x32xbf16> to vector<8x8xbf16>
    %164 = vector.extract_strided_slice %161 {offsets = [0, 0], sizes = [8, 8], strides = [1, 1]} : vector<8x32xbf16> to vector<8x8xbf16>
    %cst_59 = arith.constant dense<0.000000e+00> : vector<8x8xf32>
    %165 = tpu.matmul %162, %163, %cst_59 {dimension_numbers = #tpu.dot_dimension_numbers<[1], [1], [0], [0], [0, 0, 1, 0], [], []>} : vector<8x8xbf16>, vector<8x8xbf16>, vector<8x8xf32> -> vector<8x8xf32>
    %cst_60 = arith.constant dense<0xFF800000> : vector<8xf32>
    %166 = vector.multi_reduction <maximumf>, %165, %cst_60 [1] : vector<8x8xf32> to vector<8xf32>
    %167 = vector.shape_cast %166 : vector<8xf32> to vector<8x1xf32>
    %168 = vector.broadcast %167 : vector<8x1xf32> to vector<8x8xf32>
    %169 = arith.subf %165, %168 : vector<8x8xf32>
    %170 = math.exp %169 : vector<8x8xf32>
    %cst_61 = arith.constant dense<0.000000e+00> : vector<8xf32>
    %171 = vector.multi_reduction <add>, %170, %cst_61 [1] : vector<8x8xf32> to vector<8xf32>
    %172 = vector.shape_cast %171 : vector<8xf32> to vector<8x1xf32>
    %173 = vector.broadcast %172 : vector<8x1xf32> to vector<8x8xf32>
    %174 = arith.divf %170, %173 : vector<8x8xf32>
    %175 = arith.truncf %174 : vector<8x8xf32> to vector<8x8xbf16>
    %cst_62 = arith.constant dense<0.000000e+00> : vector<8x8xf32>
    %176 = tpu.matmul %175, %164, %cst_62 {dimension_numbers = #tpu.dot_dimension_numbers<[1], [0], [0], [1], [0, 0, 1, 1], [], []>} : vector<8x8xbf16>, vector<8x8xbf16>, vector<8x8xf32> -> vector<8x8xf32>
    %177 = arith.truncf %176 : vector<8x8xf32> to vector<8x8xbf16>
    %178 = vector.extract_strided_slice %157 {offsets = [0, 8], sizes = [8, 8], strides = [1, 1]} : vector<8x32xbf16> to vector<8x8xbf16>
    %179 = vector.extract_strided_slice %159 {offsets = [0, 8], sizes = [8, 8], strides = [1, 1]} : vector<8x32xbf16> to vector<8x8xbf16>
    %180 = vector.extract_strided_slice %161 {offsets = [0, 8], sizes = [8, 8], strides = [1, 1]} : vector<8x32xbf16> to vector<8x8xbf16>
    %cst_63 = arith.constant dense<0.000000e+00> : vector<8x8xf32>
    %181 = tpu.matmul %178, %179, %cst_63 {dimension_numbers = #tpu.dot_dimension_numbers<[1], [1], [0], [0], [0, 0, 1, 0], [], []>} : vector<8x8xbf16>, vector<8x8xbf16>, vector<8x8xf32> -> vector<8x8xf32>
    %cst_64 = arith.constant dense<0xFF800000> : vector<8xf32>
    %182 = vector.multi_reduction <maximumf>, %181, %cst_64 [1] : vector<8x8xf32> to vector<8xf32>
    %183 = vector.shape_cast %182 : vector<8xf32> to vector<8x1xf32>
    %184 = vector.broadcast %183 : vector<8x1xf32> to vector<8x8xf32>
    %185 = arith.subf %181, %184 : vector<8x8xf32>
    %186 = math.exp %185 : vector<8x8xf32>
    %cst_65 = arith.constant dense<0.000000e+00> : vector<8xf32>
    %187 = vector.multi_reduction <add>, %186, %cst_65 [1] : vector<8x8xf32> to vector<8xf32>
    %188 = vector.shape_cast %187 : vector<8xf32> to vector<8x1xf32>
    %189 = vector.broadcast %188 : vector<8x1xf32> to vector<8x8xf32>
    %190 = arith.divf %186, %189 : vector<8x8xf32>
    %191 = arith.truncf %190 : vector<8x8xf32> to vector<8x8xbf16>
    %cst_66 = arith.constant dense<0.000000e+00> : vector<8x8xf32>
    %192 = tpu.matmul %191, %180, %cst_66 {dimension_numbers = #tpu.dot_dimension_numbers<[1], [0], [0], [1], [0, 0, 1, 1], [], []>} : vector<8x8xbf16>, vector<8x8xbf16>, vector<8x8xf32> -> vector<8x8xf32>
    %193 = arith.truncf %192 : vector<8x8xf32> to vector<8x8xbf16>
    %194 = vector.extract_strided_slice %157 {offsets = [0, 16], sizes = [8, 8], strides = [1, 1]} : vector<8x32xbf16> to vector<8x8xbf16>
    %195 = vector.extract_strided_slice %159 {offsets = [0, 16], sizes = [8, 8], strides = [1, 1]} : vector<8x32xbf16> to vector<8x8xbf16>
    %196 = vector.extract_strided_slice %161 {offsets = [0, 16], sizes = [8, 8], strides = [1, 1]} : vector<8x32xbf16> to vector<8x8xbf16>
    %cst_67 = arith.constant dense<0.000000e+00> : vector<8x8xf32>
    %197 = tpu.matmul %194, %195, %cst_67 {dimension_numbers = #tpu.dot_dimension_numbers<[1], [1], [0], [0], [0, 0, 1, 0], [], []>} : vector<8x8xbf16>, vector<8x8xbf16>, vector<8x8xf32> -> vector<8x8xf32>
    %cst_68 = arith.constant dense<0xFF800000> : vector<8xf32>
    %198 = vector.multi_reduction <maximumf>, %197, %cst_68 [1] : vector<8x8xf32> to vector<8xf32>
    %199 = vector.shape_cast %198 : vector<8xf32> to vector<8x1xf32>
    %200 = vector.broadcast %199 : vector<8x1xf32> to vector<8x8xf32>
    %201 = arith.subf %197, %200 : vector<8x8xf32>
    %202 = math.exp %201 : vector<8x8xf32>
    %cst_69 = arith.constant dense<0.000000e+00> : vector<8xf32>
    %203 = vector.multi_reduction <add>, %202, %cst_69 [1] : vector<8x8xf32> to vector<8xf32>
    %204 = vector.shape_cast %203 : vector<8xf32> to vector<8x1xf32>
    %205 = vector.broadcast %204 : vector<8x1xf32> to vector<8x8xf32>
    %206 = arith.divf %202, %205 : vector<8x8xf32>
    %207 = arith.truncf %206 : vector<8x8xf32> to vector<8x8xbf16>
    %cst_70 = arith.constant dense<0.000000e+00> : vector<8x8xf32>
    %208 = tpu.matmul %207, %196, %cst_70 {dimension_numbers = #tpu.dot_dimension_numbers<[1], [0], [0], [1], [0, 0, 1, 1], [], []>} : vector<8x8xbf16>, vector<8x8xbf16>, vector<8x8xf32> -> vector<8x8xf32>
    %209 = arith.truncf %208 : vector<8x8xf32> to vector<8x8xbf16>
    %210 = vector.extract_strided_slice %157 {offsets = [0, 24], sizes = [8, 8], strides = [1, 1]} : vector<8x32xbf16> to vector<8x8xbf16>
    %211 = vector.extract_strided_slice %159 {offsets = [0, 24], sizes = [8, 8], strides = [1, 1]} : vector<8x32xbf16> to vector<8x8xbf16>
    %212 = vector.extract_strided_slice %161 {offsets = [0, 24], sizes = [8, 8], strides = [1, 1]} : vector<8x32xbf16> to vector<8x8xbf16>
    %cst_71 = arith.constant dense<0.000000e+00> : vector<8x8xf32>
    %213 = tpu.matmul %210, %211, %cst_71 {dimension_numbers = #tpu.dot_dimension_numbers<[1], [1], [0], [0], [0, 0, 1, 0], [], []>} : vector<8x8xbf16>, vector<8x8xbf16>, vector<8x8xf32> -> vector<8x8xf32>
    %cst_72 = arith.constant dense<0xFF800000> : vector<8xf32>
    %214 = vector.multi_reduction <maximumf>, %213, %cst_72 [1] : vector<8x8xf32> to vector<8xf32>
    %215 = vector.shape_cast %214 : vector<8xf32> to vector<8x1xf32>
    %216 = vector.broadcast %215 : vector<8x1xf32> to vector<8x8xf32>
    %217 = arith.subf %213, %216 : vector<8x8xf32>
    %218 = math.exp %217 : vector<8x8xf32>
    %cst_73 = arith.constant dense<0.000000e+00> : vector<8xf32>
    %219 = vector.multi_reduction <add>, %218, %cst_73 [1] : vector<8x8xf32> to vector<8xf32>
    %220 = vector.shape_cast %219 : vector<8xf32> to vector<8x1xf32>
    %221 = vector.broadcast %220 : vector<8x1xf32> to vector<8x8xf32>
    %222 = arith.divf %218, %221 : vector<8x8xf32>
    %223 = arith.truncf %222 : vector<8x8xf32> to vector<8x8xbf16>
    %cst_74 = arith.constant dense<0.000000e+00> : vector<8x8xf32>
    %224 = tpu.matmul %223, %212, %cst_74 {dimension_numbers = #tpu.dot_dimension_numbers<[1], [0], [0], [1], [0, 0, 1, 1], [], []>} : vector<8x8xbf16>, vector<8x8xbf16>, vector<8x8xf32> -> vector<8x8xf32>
    %225 = arith.truncf %224 : vector<8x8xf32> to vector<8x8xbf16>
    %226 = tpu.concatenate %177, %193, %209, %225 in 1 : vector<8x8xbf16>, vector<8x8xbf16>, vector<8x8xbf16>, vector<8x8xbf16> -> vector<8x32xbf16>
    %cst_75 = arith.constant dense<0.000000e+00> : vector<8x32xf32>
    %227 = tpu.matmul %226, %4, %cst_75 {dimension_numbers = #tpu.dot_dimension_numbers<[1], [0], [0], [1], [0, 0, 1, 1], [], []>} : vector<8x32xbf16>, vector<32x32xbf16>, vector<8x32xf32> -> vector<8x32xf32>
    %228 = vector.broadcast %5 : vector<1x32xf32> to vector<8x32xf32>
    %229 = arith.addf %227, %228 : vector<8x32xf32>
    %230 = arith.addf %229, %149 : vector<8x32xf32>
    %cst_76 = arith.constant dense<0.000000e+00> : vector<8xf32>
    %231 = vector.multi_reduction <add>, %230, %cst_76 [1] : vector<8x32xf32> to vector<8xf32>
    %232 = vector.shape_cast %231 : vector<8xf32> to vector<8x1xf32>
    %cst_77 = arith.constant 3.200000e+01 : f32
    %233 = vector.broadcast %cst_77 : f32 to vector<8x1xf32>
    %234 = arith.divf %232, %233 : vector<8x1xf32>
    %235 = vector.broadcast %234 : vector<8x1xf32> to vector<8x32xf32>
    %236 = arith.subf %230, %235 : vector<8x32xf32>
    %237 = arith.mulf %236, %236 : vector<8x32xf32>
    %cst_78 = arith.constant dense<0.000000e+00> : vector<8xf32>
    %238 = vector.multi_reduction <add>, %237, %cst_78 [1] : vector<8x32xf32> to vector<8xf32>
    %239 = vector.shape_cast %238 : vector<8xf32> to vector<8x1xf32>
    %cst_79 = arith.constant 3.200000e+01 : f32
    %240 = vector.broadcast %cst_79 : f32 to vector<8x1xf32>
    %241 = arith.divf %239, %240 : vector<8x1xf32>
    %242 = vector.broadcast %234 : vector<8x1xf32> to vector<8x32xf32>
    %243 = arith.subf %230, %242 : vector<8x32xf32>
    %cst_80 = arith.constant 9.99999974E-6 : f32
    %244 = vector.broadcast %cst_80 : f32 to vector<8x1xf32>
    %245 = arith.addf %241, %244 : vector<8x1xf32>
    %246 = math.rsqrt %245 : vector<8x1xf32>
    %247 = vector.broadcast %246 : vector<8x1xf32> to vector<8x32xf32>
    %248 = arith.mulf %243, %247 : vector<8x32xf32>
    %249 = vector.broadcast %12 : vector<1x32xf32> to vector<8x32xf32>
    %250 = arith.mulf %248, %249 : vector<8x32xf32>
    %251 = vector.broadcast %13 : vector<1x32xf32> to vector<8x32xf32>
    %252 = arith.addf %250, %251 : vector<8x32xf32>
    %c0_81 = arith.constant 0 : index
    %c0_82 = arith.constant 0 : index
    %c0_83 = arith.constant 0 : index
    %253 = vector.load %arg14[%c0_81, %c0_82, %c0_83] : memref<1x8x32xf32, #tpu.memory_space<vmem>>, vector<1x8x32xf32>
    %254 = vector.shape_cast %253 : vector<1x8x32xf32> to vector<8x32xf32>
    %255 = vector.shape_cast %252 : vector<8x32xf32> to vector<1x8x32xf32>
    tpu.vector_store %arg14[%c0_81, %c0_82, %c0_83], %255 {strides = array<i32>} : memref<1x8x32xf32, #tpu.memory_space<vmem>>, vector<1x8x32xf32>,
    return
  }
  func.func @transform_0(%arg0: i32) -> (i32, i32, i32) {
    %c0_i32 = arith.constant 0 : i32
    %c0_i32_0 = arith.constant 0 : i32
    %c0_i32_1 = arith.constant 0 : i32
    return %arg0, %c0_i32, %c0_i32_0 : i32, i32, i32
  }
  func.func @transform_1(%arg0: i32) -> (i32, i32) {
    %c0_i32 = arith.constant 0 : i32
    %c0_i32_0 = arith.constant 0 : i32
    %c0_i32_1 = arith.constant 0 : i32
    return %c0_i32, %c0_i32_0 : i32, i32
  }
  func.func @transform_2(%arg0: i32) -> (i32, i32) {
    %c0_i32 = arith.constant 0 : i32
    %c0_i32_0 = arith.constant 0 : i32
    %c0_i32_1 = arith.constant 0 : i32
    return %c0_i32, %c0_i32_0 : i32, i32
  }
  func.func @transform_3(%arg0: i32) -> (i32, i32) {
    %c0_i32 = arith.constant 0 : i32
    %c0_i32_0 = arith.constant 0 : i32
    %c0_i32_1 = arith.constant 0 : i32
    return %c0_i32, %c0_i32_0 : i32, i32
  }
  func.func @transform_4(%arg0: i32) -> (i32, i32) {
    %c0_i32 = arith.constant 0 : i32
    %c0_i32_0 = arith.constant 0 : i32
    %c0_i32_1 = arith.constant 0 : i32
    return %c0_i32, %c0_i32_0 : i32, i32
  }
  func.func @transform_5(%arg0: i32) -> (i32, i32) {
    %c0_i32 = arith.constant 0 : i32
    %c0_i32_0 = arith.constant 0 : i32
    %c0_i32_1 = arith.constant 0 : i32
    return %c0_i32, %c0_i32_0 : i32, i32
  }
  func.func @transform_6(%arg0: i32) -> (i32, i32) {
    %c0_i32 = arith.constant 0 : i32
    %c0_i32_0 = arith.constant 0 : i32
    %c0_i32_1 = arith.constant 0 : i32
    return %c0_i32, %c0_i32_0 : i32, i32
  }
  func.func @transform_7(%arg0: i32) -> (i32, i32) {
    %c0_i32 = arith.constant 0 : i32
    %c0_i32_0 = arith.constant 0 : i32
    %c0_i32_1 = arith.constant 0 : i32
    return %c0_i32, %c0_i32_0 : i32, i32
  }
  func.func @transform_8(%arg0: i32) -> (i32, i32) {
    %c0_i32 = arith.constant 0 : i32
    %c0_i32_0 = arith.constant 0 : i32
    %c0_i32_1 = arith.constant 0 : i32
    return %c0_i32, %c0_i32_0 : i32, i32
  }
  func.func @transform_9(%arg0: i32) -> (i32, i32) {
    %c0_i32 = arith.constant 0 : i32
    %c0_i32_0 = arith.constant 0 : i32
    %c0_i32_1 = arith.constant 0 : i32
    return %c0_i32, %c0_i32_0 : i32, i32
  }
  func.func @transform_10(%arg0: i32) -> (i32, i32) {
    %c0_i32 = arith.constant 0 : i32
    %c0_i32_0 = arith.constant 0 : i32
    %c0_i32_1 = arith.constant 0 : i32
    return %c0_i32, %c0_i32_0 : i32, i32
  }
  func.func @transform_11(%arg0: i32) -> (i32, i32) {
    %c0_i32 = arith.constant 0 : i32
    %c0_i32_0 = arith.constant 0 : i32
    %c0_i32_1 = arith.constant 0 : i32
    return %c0_i32, %c0_i32_0 : i32, i32
  }
  func.func @transform_12(%arg0: i32) -> (i32, i32) {
    %c0_i32 = arith.constant 0 : i32
    %c0_i32_0 = arith.constant 0 : i32
    %c0_i32_1 = arith.constant 0 : i32
    return %c0_i32, %c0_i32_0 : i32, i32
  }
  func.func @transform_13(%arg0: i32) -> (i32, i32, i32) {
    %c0_i32 = arith.constant 0 : i32
    %c0_i32_0 = arith.constant 0 : i32
    %c0_i32_1 = arith.constant 0 : i32
    return %arg0, %c0_i32, %c0_i32_0 : i32, i32, i32
  }
}

</mosaic_0001>

<llo_original>
// kernel: encode_forward.1
$region0: #{encode_forward.1}
  #allocation0 [shape = 'u32[]', space=smem, size = 0x4, offset = 0x4, fixed_abs, tag = 'smem constant byte address 0x4 - core index']
  #allocation1 [shape = 'u32[144,128]{1,0:T(1,128)}', space=vmem, size = 0x12000, scoped, tag = 'internal scratch']
  %s0 = inlined_call_operand.vmem [shape: f32[2,8,32], index: 0, kind: input, shape index: {}]
  %s1 = inlined_call_operand.vmem [shape: bf16[32,96], index: 1, kind: input, shape index: {}]
  %s2 = inlined_call_operand.vmem [shape: f32[1,96], index: 2, kind: input, shape index: {}]
  %s3 = inlined_call_operand.vmem [shape: bf16[32,32], index: 3, kind: input, shape index: {}]
  %s4 = inlined_call_operand.vmem [shape: f32[1,32], index: 4, kind: input, shape index: {}]
  %s5 = inlined_call_operand.vmem [shape: bf16[32,128], index: 5, kind: input, shape index: {}]
  %s6 = inlined_call_operand.vmem [shape: f32[1,128], index: 6, kind: input, shape index: {}]
  %s7 = inlined_call_operand.vmem [shape: bf16[128,32], index: 7, kind: input, shape index: {}]
  %s8 = inlined_call_operand.vmem [shape: f32[1,32], index: 8, kind: input, shape index: {}]
  %s9 = inlined_call_operand.vmem [shape: f32[1,32], index: 9, kind: input, shape index: {}]
  %s10 = inlined_call_operand.vmem [shape: f32[1,32], index: 10, kind: input, shape index: {}]
  %s11 = inlined_call_operand.vmem [shape: f32[1,32], index: 11, kind: input, shape index: {}]
  %s12 = inlined_call_operand.vmem [shape: f32[1,32], index: 12, kind: input, shape index: {}]
  %s13 = inlined_call_operand.hbm [shape: f32[2,8,32], index: 13, kind: output, shape index: {}]
  %s14 = sld [smem:[#allocation0]]
  $region85: #{encode_forward.1} parent=0
    _
  %s16 = ssub.s32 1, %s14
  %s17 = scalar_select 0, %s16, %s14
  $region1: #{encode_forward.1} parent=0
    #allocation2 [shape = 'u8[8192]{0}', space=vmem, size = 0x2000, scoped, tag = 'output window, operand 0']
    #allocation3 [shape = 's32[2]{0}', space=sflag, size = 0x8, scoped, tag = 'scoped memory for encode_forward.1']
    %18 = vsyncpa [#allocation3], 0
    %s19 = scalar_lea.sflag [#allocation3], 1
    %20 = vsyncpa %s19, 0
    loop: start=0, step=1, limit=4
    $region2: #{encode_forward.1} parent=1 // loop_pre_header
      _
    $region3: #{encode_forward.1} parent=1 // loop_header
      %s22 = sphi 0, %s26
      %p23 = scmp.ge.s32.totalorder %s22, 4
      %s32 = sphi 0, %s34
      %s35 = sphi 0, %s32
      %s36 = sphi 0, %s35
      %s52 = sphi 0, %s36
      %s56 = sphi 0, %s56
      %s58 = sphi 0, %s56
      %s59 = sphi 0, %s58
      %s73 = sphi 0, %s59
      %s77 = sphi 0, %s77
      %s79 = sphi 0, %s77
      %s80 = sphi 0, %s79
      %s94 = sphi 0, %s80
      %s98 = sphi 0, %s98
      %s100 = sphi 0, %s98
      %s101 = sphi 0, %s100
      %s115 = sphi 0, %s101
      %s119 = sphi 0, %s119
      %s121 = sphi 0, %s119
      %s122 = sphi 0, %s121
      %s136 = sphi 0, %s122
      %s140 = sphi 0, %s140
      %s142 = sphi 0, %s140
      %s143 = sphi 0, %s142
      %s157 = sphi 0, %s143
      %s161 = sphi 0, %s161
      %s163 = sphi 0, %s161
      %s164 = sphi 0, %s163
      %s178 = sphi 0, %s164
      %s182 = sphi 0, %s182
      %s184 = sphi 0, %s182
      %s185 = sphi 0, %s184
      %s199 = sphi 0, %s185
      %s203 = sphi 0, %s203
      %s205 = sphi 0, %s203
      %s206 = sphi 0, %s205
      %s220 = sphi 0, %s206
      %s224 = sphi 0, %s224
      %s226 = sphi 0, %s224
      %s227 = sphi 0, %s226
      %s241 = sphi 0, %s227
      %s245 = sphi 0, %s245
      %s247 = sphi 0, %s245
      %s248 = sphi 0, %s247
      %s262 = sphi 0, %s248
      %s266 = sphi 0, %s266
      %s268 = sphi 0, %s266
      %s269 = sphi 0, %s268
      %s283 = sphi 0, %s269
      %s287 = sphi 0, %s287
      %s289 = sphi 0, %s287
      %s290 = sphi 0, %s289
      %s304 = sphi 0, %s290
      %s310 = sphi 0, %s312
      %s313 = sphi 0, %s310
      %s314 = sphi 0, %s313
      %s330 = sphi 0, %s314
    $region4: #{encode_forward.1} parent=1 // loop_header_branch
      %25 = sbr.rel (%p23) target = $region8
    $region5: #{encode_forward.1} parent=1 // loop_body
      %s27 = ssub.s32 %s22, 1
      %s28 = ssub.s32 %s22, 2
      %s29 = sadd.s32 %s22, 1
      %s30 = ssub.s32 %s22, %s29
      %p31 = scmp.eq.s32.totalorder %s30, 0
      %s33 = sadd.s32 %s32, 1
      %s34 = scalar_select %p31, %s32, %s33
      %p37 = pneg %p31
      %p38 = scmp.eq.s32.totalorder %s22, 1
      %p39 = por %p37, %p38
      %p40 = scmp.ne.s32.totalorder %s32, %s35
      %p41 = scmp.eq.s32.totalorder %s22, 0
      %p42 = por %p40, %p41
      %p43 = scmp.ne.s32.totalorder %s32, %s35
      %p44 = scmp.eq.s32.totalorder %s27, 1
      %p45 = por %p43, %p44
      %p46 = scmp.ne.s32.totalorder %s35, %s36
      %p47 = scmp.eq.s32.totalorder %s27, 0
      %p48 = por %p46, %p47
      %p49 = scmp.ne.s32.totalorder %s35, %s36
      %p50 = scmp.eq.s32.totalorder %s28, 1
      %p51 = por %p49, %p50
      %p53 = scmp.ne.s32.totalorder %s36, %s52
      %p54 = scmp.eq.s32.totalorder %s28, 0
      %p55 = por %p53, %p54
      %s57 = sadd.s32 %s56, 1
      %p60 = scmp.eq.s32.totalorder %s22, 1
      %p61 = scmp.ne.s32.totalorder %s56, %s58
      %p62 = scmp.eq.s32.totalorder %s22, 0
      %p63 = por %p61, %p62
      %p64 = scmp.ne.s32.totalorder %s56, %s58
      %p65 = scmp.eq.s32.totalorder %s27, 1
      %p66 = por %p64, %p65
      %p67 = scmp.ne.s32.totalorder %s58, %s59
      %p68 = scmp.eq.s32.totalorder %s27, 0
      %p69 = por %p67, %p68
      %p70 = scmp.ne.s32.totalorder %s58, %s59
      %p71 = scmp.eq.s32.totalorder %s28, 1
      %p72 = por %p70, %p71
      %p74 = scmp.ne.s32.totalorder %s59, %s73
      %p75 = scmp.eq.s32.totalorder %s28, 0
      %p76 = por %p74, %p75
      %s78 = sadd.s32 %s77, 1
      %p81 = scmp.eq.s32.totalorder %s22, 1
      %p82 = scmp.ne.s32.totalorder %s77, %s79
      %p83 = scmp.eq.s32.totalorder %s22, 0
      %p84 = por %p82, %p83
      %p85 = scmp.ne.s32.totalorder %s77, %s79
      %p86 = scmp.eq.s32.totalorder %s27, 1
      %p87 = por %p85, %p86
      %p88 = scmp.ne.s32.totalorder %s79, %s80
      %p89 = scmp.eq.s32.totalorder %s27, 0
      %p90 = por %p88, %p89
      %p91 = scmp.ne.s32.totalorder %s79, %s80
      %p92 = scmp.eq.s32.totalorder %s28, 1
      %p93 = por %p91, %p92
      %p95 = scmp.ne.s32.totalorder %s80, %s94
      %p96 = scmp.eq.s32.totalorder %s28, 0
      %p97 = por %p95, %p96
      %s99 = sadd.s32 %s98, 1
      %p102 = scmp.eq.s32.totalorder %s22, 1
      %p103 = scmp.ne.s32.totalorder %s98, %s100
      %p104 = scmp.eq.s32.totalorder %s22, 0
      %p105 = por %p103, %p104
      %p106 = scmp.ne.s32.totalorder %s98, %s100
      %p107 = scmp.eq.s32.totalorder %s27, 1
      %p108 = por %p106, %p107
      %p109 = scmp.ne.s32.totalorder %s100, %s101
      %p110 = scmp.eq.s32.totalorder %s27, 0
      %p111 = por %p109, %p110
      %p112 = scmp.ne.s32.totalorder %s100, %s101
      %p113 = scmp.eq.s32.totalorder %s28, 1
      %p114 = por %p112, %p113
      %p116 = scmp.ne.s32.totalorder %s101, %s115
      %p117 = scmp.eq.s32.totalorder %s28, 0
      %p118 = por %p116, %p117
      %s120 = sadd.s32 %s119, 1
      %p123 = scmp.eq.s32.totalorder %s22, 1
      %p124 = scmp.ne.s32.totalorder %s119, %s121
      %p125 = scmp.eq.s32.totalorder %s22, 0
      %p126 = por %p124, %p125
      %p127 = scmp.ne.s32.totalorder %s119, %s121
      %p128 = scmp.eq.s32.totalorder %s27, 1
      %p129 = por %p127, %p128
      %p130 = scmp.ne.s32.totalorder %s121, %s122
      %p131 = scmp.eq.s32.totalorder %s27, 0
      %p132 = por %p130, %p131
      %p133 = scmp.ne.s32.totalorder %s121, %s122
      %p134 = scmp.eq.s32.totalorder %s28, 1
      %p135 = por %p133, %p134
      %p137 = scmp.ne.s32.totalorder %s122, %s136
      %p138 = scmp.eq.s32.totalorder %s28, 0
      %p139 = por %p137, %p138
      %s141 = sadd.s32 %s140, 1
      %p144 = scmp.eq.s32.totalorder %s22, 1
      %p145 = scmp.ne.s32.totalorder %s140, %s142
      %p146 = scmp.eq.s32.totalorder %s22, 0
      %p147 = por %p145, %p146
      %p148 = scmp.ne.s32.totalorder %s140, %s142
      %p149 = scmp.eq.s32.totalorder %s27, 1
      %p150 = por %p148, %p149
      %p151 = scmp.ne.s32.totalorder %s142, %s143
      %p152 = scmp.eq.s32.totalorder %s27, 0
      %p153 = por %p151, %p152
      %p154 = scmp.ne.s32.totalorder %s142, %s143
      %p155 = scmp.eq.s32.totalorder %s28, 1
      %p156 = por %p154, %p155
      %p158 = scmp.ne.s32.totalorder %s143, %s157
      %p159 = scmp.eq.s32.totalorder %s28, 0
      %p160 = por %p158, %p159
      %s162 = sadd.s32 %s161, 1
      %p165 = scmp.eq.s32.totalorder %s22, 1
      %p166 = scmp.ne.s32.totalorder %s161, %s163
      %p167 = scmp.eq.s32.totalorder %s22, 0
      %p168 = por %p166, %p167
      %p169 = scmp.ne.s32.totalorder %s161, %s163
      %p170 = scmp.eq.s32.totalorder %s27, 1
      %p171 = por %p169, %p170
      %p172 = scmp.ne.s32.totalorder %s163, %s164
      %p173 = scmp.eq.s32.totalorder %s27, 0
      %p174 = por %p172, %p173
      %p175 = scmp.ne.s32.totalorder %s163, %s164
      %p176 = scmp.eq.s32.totalorder %s28, 1
      %p177 = por %p175, %p176
      %p179 = scmp.ne.s32.totalorder %s164, %s178
      %p180 = scmp.eq.s32.totalorder %s28, 0
      %p181 = por %p179, %p180
      %s183 = sadd.s32 %s182, 1
      %p186 = scmp.eq.s32.totalorder %s22, 1
      %p187 = scmp.ne.s32.totalorder %s182, %s184
      %p188 = scmp.eq.s32.totalorder %s22, 0
      %p189 = por %p187, %p188
      %p190 = scmp.ne.s32.totalorder %s182, %s184
      %p191 = scmp.eq.s32.totalorder %s27, 1
      %p192 = por %p190, %p191
      %p193 = scmp.ne.s32.totalorder %s184, %s185
      %p194 = scmp.eq.s32.totalorder %s27, 0
      %p195 = por %p193, %p194
      %p196 = scmp.ne.s32.totalorder %s184, %s185
      %p197 = scmp.eq.s32.totalorder %s28, 1
      %p198 = por %p196, %p197
      %p200 = scmp.ne.s32.totalorder %s185, %s199
      %p201 = scmp.eq.s32.totalorder %s28, 0
      %p202 = por %p200, %p201
      %s204 = sadd.s32 %s203, 1
      %p207 = scmp.eq.s32.totalorder %s22, 1
      %p208 = scmp.ne.s32.totalorder %s203, %s205
      %p209 = scmp.eq.s32.totalorder %s22, 0
      %p210 = por %p208, %p209
      %p211 = scmp.ne.s32.totalorder %s203, %s205
      %p212 = scmp.eq.s32.totalorder %s27, 1
      %p213 = por %p211, %p212
      %p214 = scmp.ne.s32.totalorder %s205, %s206
      %p215 = scmp.eq.s32.totalorder %s27, 0
      %p216 = por %p214, %p215
      %p217 = scmp.ne.s32.totalorder %s205, %s206
      %p218 = scmp.eq.s32.totalorder %s28, 1
      %p219 = por %p217, %p218
      %p221 = scmp.ne.s32.totalorder %s206, %s220
      %p222 = scmp.eq.s32.totalorder %s28, 0
      %p223 = por %p221, %p222
      %s225 = sadd.s32 %s224, 1
      %p228 = scmp.eq.s32.totalorder %s22, 1
      %p229 = scmp.ne.s32.totalorder %s224, %s226
      %p230 = scmp.eq.s32.totalorder %s22, 0
      %p231 = por %p229, %p230
      %p232 = scmp.ne.s32.totalorder %s224, %s226
      %p233 = scmp.eq.s32.totalorder %s27, 1
      %p234 = por %p232, %p233
      %p235 = scmp.ne.s32.totalorder %s226, %s227
      %p236 = scmp.eq.s32.totalorder %s27, 0
      %p237 = por %p235, %p236
      %p238 = scmp.ne.s32.totalorder %s226, %s227
      %p239 = scmp.eq.s32.totalorder %s28, 1
      %p240 = por %p238, %p239
      %p242 = scmp.ne.s32.totalorder %s227, %s241
      %p243 = scmp.eq.s32.totalorder %s28, 0
      %p244 = por %p242, %p243
      %s246 = sadd.s32 %s245, 1
      %p249 = scmp.eq.s32.totalorder %s22, 1
      %p250 = scmp.ne.s32.totalorder %s245, %s247
      %p251 = scmp.eq.s32.totalorder %s22, 0
      %p252 = por %p250, %p251
      %p253 = scmp.ne.s32.totalorder %s245, %s247
      %p254 = scmp.eq.s32.totalorder %s27, 1
      %p255 = por %p253, %p254
      %p256 = scmp.ne.s32.totalorder %s247, %s248
      %p257 = scmp.eq.s32.totalorder %s27, 0
      %p258 = por %p256, %p257
      %p259 = scmp.ne.s32.totalorder %s247, %s248
      %p260 = scmp.eq.s32.totalorder %s28, 1
      %p261 = por %p259, %p260
      %p263 = scmp.ne.s32.totalorder %s248, %s262
      %p264 = scmp.eq.s32.totalorder %s28, 0
      %p265 = por %p263, %p264
      %s267 = sadd.s32 %s266, 1
      %p270 = scmp.eq.s32.totalorder %s22, 1
      %p271 = scmp.ne.s32.totalorder %s266, %s268
      %p272 = scmp.eq.s32.totalorder %s22, 0
      %p273 = por %p271, %p272
      %p274 = scmp.ne.s32.totalorder %s266, %s268
      %p275 = scmp.eq.s32.totalorder %s27, 1
      %p276 = por %p274, %p275
      %p277 = scmp.ne.s32.totalorder %s268, %s269
      %p278 = scmp.eq.s32.totalorder %s27, 0
      %p279 = por %p277, %p278
      %p280 = scmp.ne.s32.totalorder %s268, %s269
      %p281 = scmp.eq.s32.totalorder %s28, 1
      %p282 = por %p280, %p281
      %p284 = scmp.ne.s32.totalorder %s269, %s283
      %p285 = scmp.eq.s32.totalorder %s28, 0
      %p286 = por %p284, %p285
      %s288 = sadd.s32 %s287, 1
      %p291 = scmp.eq.s32.totalorder %s22, 1
      %p292 = scmp.ne.s32.totalorder %s287, %s289
      %p293 = scmp.eq.s32.totalorder %s22, 0
      %p294 = por %p292, %p293
      %p295 = scmp.ne.s32.totalorder %s287, %s289
      %p296 = scmp.eq.s32.totalorder %s27, 1
      %p297 = por %p295, %p296
      %p298 = scmp.ne.s32.totalorder %s289, %s290
      %p299 = scmp.eq.s32.totalorder %s27, 0
      %p300 = por %p298, %p299
      %p301 = scmp.ne.s32.totalorder %s289, %s290
      %p302 = scmp.eq.s32.totalorder %s28, 1
      %p303 = por %p301, %p302
      %p305 = scmp.ne.s32.totalorder %s290, %s304
      %p306 = scmp.eq.s32.totalorder %s28, 0
      %p307 = por %p305, %p306
      %s308 = ssub.s32 %s22, %s29
      %p309 = scmp.eq.s32.totalorder %s308, 0
      %s311 = sadd.s32 %s310, 1
      %s312 = scalar_select %p309, %s310, %s311
      %p315 = pneg %p309
      %p316 = scmp.eq.s32.totalorder %s22, 1
      %p317 = por %p315, %p316
      %p318 = scmp.ne.s32.totalorder %s310, %s313
      %p319 = scmp.eq.s32.totalorder %s22, 0
      %p320 = por %p318, %p319
      %p321 = scmp.ne.s32.totalorder %s310, %s313
      %p322 = scmp.eq.s32.totalorder %s27, 1
      %p323 = por %p321, %p322
      %p324 = scmp.ne.s32.totalorder %s313, %s314
      %p325 = scmp.eq.s32.totalorder %s27, 0
      %p326 = por %p324, %p325
      %p327 = scmp.ne.s32.totalorder %s313, %s314
      %p328 = scmp.eq.s32.totalorder %s28, 1
      %p329 = por %p327, %p328
      %p331 = scmp.ne.s32.totalorder %s314, %s330
      %p332 = scmp.eq.s32.totalorder %s28, 0
      %p333 = por %p331, %p332
      %p334 = scmp.le.s32.totalorder 1, %s22
      %p335 = scmp.lt.s32.totalorder %s22, 3
      %p336 = pnand %p334, %p335
      %p337 = pneg %p336
      // Predicated region
      $region9: #{encode_forward.1} parent=5 // pred_check
        _
      $region10: #{encode_forward.1} parent=5 // pred_check_branch
        %339 = sbr.rel (%p336) target = $region12
      $region11: #{encode_forward.1} parent=5 // pred_region
        %s340 = ssub.s32 %s22, 1
        // Predicated region
        $region13: #{encode_forward.1} parent=11 // pred_check
          %p341 = pneg %p69
        $region14: #{encode_forward.1} parent=11 // pred_check_branch
          %343 = sbr.rel (%p341) target = $region16
        $region15: #{encode_forward.1} parent=11 // pred_region
          _
        $region16: #{encode_forward.1} parent=11 // pred_fallthru
          _
        // Predicated region
        $region17: #{encode_forward.1} parent=11 // pred_check
          %p344 = pneg %p90
        $region18: #{encode_forward.1} parent=11 // pred_check_branch
          %346 = sbr.rel (%p344) target = $region20
        $region19: #{encode_forward.1} parent=11 // pred_region
          _
        $region20: #{encode_forward.1} parent=11 // pred_fallthru
          _
        // Predicated region
        $region21: #{encode_forward.1} parent=11 // pred_check
          %p347 = pneg %p111
        $region22: #{encode_forward.1} parent=11 // pred_check_branch
          %349 = sbr.rel (%p347) target = $region24
        $region23: #{encode_forward.1} parent=11 // pred_region
          _
        $region24: #{encode_forward.1} parent=11 // pred_fallthru
          _
        // Predicated region
        $region25: #{encode_forward.1} parent=11 // pred_check
          %p350 = pneg %p132
        $region26: #{encode_forward.1} parent=11 // pred_check_branch
          %352 = sbr.rel (%p350) target = $region28
        $region27: #{encode_forward.1} parent=11 // pred_region
          _
        $region28: #{encode_forward.1} parent=11 // pred_fallthru
          _
        // Predicated region
        $region29: #{encode_forward.1} parent=11 // pred_check
          %p353 = pneg %p153
        $region30: #{encode_forward.1} parent=11 // pred_check_branch
          %355 = sbr.rel (%p353) target = $region32
        $region31: #{encode_forward.1} parent=11 // pred_region
          _
        $region32: #{encode_forward.1} parent=11 // pred_fallthru
          _
        // Predicated region
        $region33: #{encode_forward.1} parent=11 // pred_check
          %p356 = pneg %p174
        $region34: #{encode_forward.1} parent=11 // pred_check_branch
          %358 = sbr.rel (%p356) target = $region36
        $region35: #{encode_forward.1} parent=11 // pred_region
          _
        $region36: #{encode_forward.1} parent=11 // pred_fallthru
          _
        // Predicated region
        $region37: #{encode_forward.1} parent=11 // pred_check
          %p359 = pneg %p195
        $region38: #{encode_forward.1} parent=11 // pred_check_branch
          %361 = sbr.rel (%p359) target = $region40
        $region39: #{encode_forward.1} parent=11 // pred_region
          _
        $region40: #{encode_forward.1} parent=11 // pred_fallthru
          _
        // Predicated region
        $region41: #{encode_forward.1} parent=11 // pred_check
          %p362 = pneg %p216
        $region42: #{encode_forward.1} parent=11 // pred_check_branch
          %364 = sbr.rel (%p362) target = $region44
        $region43: #{encode_forward.1} parent=11 // pred_region
          _
        $region44: #{encode_forward.1} parent=11 // pred_fallthru
          _
        // Predicated region
        $region45: #{encode_forward.1} parent=11 // pred_check
          %p365 = pneg %p237
        $region46: #{encode_forward.1} parent=11 // pred_check_branch
          %367 = sbr.rel (%p365) target = $region48
        $region47: #{encode_forward.1} parent=11 // pred_region
          _
        $region48: #{encode_forward.1} parent=11 // pred_fallthru
          _
        // Predicated region
        $region49: #{encode_forward.1} parent=11 // pred_check
          %p368 = pneg %p258
        $region50: #{encode_forward.1} parent=11 // pred_check_branch
          %370 = sbr.rel (%p368) target = $region52
        $region51: #{encode_forward.1} parent=11 // pred_region
          _
        $region52: #{encode_forward.1} parent=11 // pred_fallthru
          _
        // Predicated region
        $region53: #{encode_forward.1} parent=11 // pred_check
          %p371 = pneg %p279
        $region54: #{encode_forward.1} parent=11 // pred_check_branch
          %373 = sbr.rel (%p371) target = $region56
        $region55: #{encode_forward.1} parent=11 // pred_region
          _
        $region56: #{encode_forward.1} parent=11 // pred_fallthru
          _
        // Predicated region
        $region57: #{encode_forward.1} parent=11 // pred_check
          %p374 = pneg %p300
        $region58: #{encode_forward.1} parent=11 // pred_check_branch
          %376 = sbr.rel (%p374) target = $region60
        $region59: #{encode_forward.1} parent=11 // pred_region
          _
        $region60: #{encode_forward.1} parent=11 // pred_fallthru
          _
      $region12: #{encode_forward.1} parent=5 // pred_fallthru
        _
      %p377 = scmp.lt.s32.totalorder %s22, 2
      // Predicated region
      $region61: #{encode_forward.1} parent=5 // pred_check
        %p378 = pneg %p377
      $region62: #{encode_forward.1} parent=5 // pred_check_branch
        %380 = sbr.rel (%p378) target = $region64
      $region63: #{encode_forward.1} parent=5 // pred_region
        // Predicated region
        $region65: #{encode_forward.1} parent=63 // pred_check
          %p381 = pneg %p42
        $region66: #{encode_forward.1} parent=63 // pred_check_branch
          %383 = sbr.rel (%p381) target = $region68
        $region67: #{encode_forward.1} parent=63 // pred_region
          %p384 = scmp.lt.s32.totalorder %s22, 1
          %s385 = scalar_select %p384, %s22, 1
          %s386 = smul.addr %s385, 8
          %s387 = scalar_lea.vmem %s0, %s386
        $region68: #{encode_forward.1} parent=63 // pred_fallthru
          _
      $region64: #{encode_forward.1} parent=5 // pred_fallthru
        _
      %p388 = scmp.le.s32.totalorder 1, %s22
      %p389 = scmp.lt.s32.totalorder %s22, 3
      %p390 = pnand %p388, %p389
      %p391 = pneg %p390
      // Predicated region
      $region69: #{encode_forward.1} parent=5 // pred_check
        _
      $region70: #{encode_forward.1} parent=5 // pred_check_branch
        %393 = sbr.rel (%p390) target = $region72
      $region71: #{encode_forward.1} parent=5 // pred_region
        %s394 = ssub.s32 %s22, 1
        %p395 = scmp.lt.s32.totalorder %s27, 1
        %s396 = scalar_select %p395, %s27, 1
        %s397 = smul.addr %s396, 8
        %s398 = scalar_lea.vmem %s0, %s397
        %p399 = pneg %p48
        %p400 = pneg %p45
        %p401 = pneg %p69
        %p402 = pneg %p66
        %p403 = pneg %p90
        %p404 = pneg %p87
        %p405 = pneg %p111
        %p406 = pneg %p108
        %p407 = pneg %p132
        %p408 = pneg %p129
        %p409 = pneg %p153
        %p410 = pneg %p150
        %p411 = pneg %p174
        %p412 = pneg %p171
        %p413 = pneg %p195
        %p414 = pneg %p192
        %p415 = pneg %p216
        %p416 = pneg %p213
        %p417 = pneg %p237
        %p418 = pneg %p234
        %p419 = pneg %p258
        %p420 = pneg %p255
        %p421 = pneg %p279
        %p422 = pneg %p276
        %p423 = pneg %p300
        %p424 = pneg %p297
        %p425 = pneg %p326
        %p426 = pneg %p323
        %s427 = sand.u32 %s313, 1
        %s428 = scalar_lea.sflag [#allocation3], %s427
        %s429 = sand.u32 %s313, 1
        %s430 = smul.addr %s429, 8
        %s431 = scalar_lea.vmem [#allocation2], %s430
        %p432 = scmp.lt.s32.totalorder %s27, 1
        %s433 = scalar_select %p432, %s27, 1
        %s434 = smul.addr %s433, 8
        %s435 = scalar_lea.vmem %s0, %s434
        %v437 = vld [vmem:[%s435] sm:$0xff]
        %v438 = vld [vmem:[%s1] sm:$0xf]
        %v439 = vld [vmem:[%s1 + $0x4] sm:$0xf]
        %v440 = vld [vmem:[%s1 + $0x8] sm:$0xf]
        %v441 = vld [vmem:[%s1 + $0xc] sm:$0xf]
        %v442 = vld [vmem:[%s2] sm:$0x1]
        %v443 = vld [vmem:[%s3] sm:$0xf]
        %v444 = vld [vmem:[%s3 + $0x4] sm:$0xf]
        %v445 = vld [vmem:[%s3 + $0x8] sm:$0xf]
        %v446 = vld [vmem:[%s3 + $0xc] sm:$0xf]
        %v447 = vld [vmem:[%s4] sm:$0x1]
        %v448 = vld [vmem:[%s5] sm:$0xf]
        %v449 = vld [vmem:[%s5 + $0x4] sm:$0xf]
        %v450 = vld [vmem:[%s5 + $0x8] sm:$0xf]
        %v451 = vld [vmem:[%s5 + $0xc] sm:$0xf]
        %v452 = vld [vmem:[%s6] sm:$0x1]
        %v453 = vld [vmem:[%s7] sm:$0xf]
        %v454 = vld [vmem:[%s7 + $0x4] sm:$0xf]
        %v455 = vld [vmem:[%s7 + $0x8] sm:$0xf]
        %v456 = vld [vmem:[%s7 + $0xc] sm:$0xf]
        %v457 = vld [vmem:[%s7 + $0x10] sm:$0xf]
        %v458 = vld [vmem:[%s7 + $0x14] sm:$0xf]
        %v459 = vld [vmem:[%s7 + $0x18] sm:$0xf]
        %v460 = vld [vmem:[%s7 + $0x1c] sm:$0xf]
        %v461 = vld [vmem:[%s7 + $0x20] sm:$0xf]
        %v462 = vld [vmem:[%s7 + $0x24] sm:$0xf]
        %v463 = vld [vmem:[%s7 + $0x28] sm:$0xf]
        %v464 = vld [vmem:[%s7 + $0x2c] sm:$0xf]
        %v465 = vld [vmem:[%s7 + $0x30] sm:$0xf]
        %v466 = vld [vmem:[%s7 + $0x34] sm:$0xf]
        %v467 = vld [vmem:[%s7 + $0x38] sm:$0xf]
        %v468 = vld [vmem:[%s7 + $0x3c] sm:$0xf]
        %v469 = vld [vmem:[%s8] sm:$0x1]
        %v470 = vld [vmem:[%s9] sm:$0x1]
        %v471 = vld [vmem:[%s10] sm:$0x1]
        %v472 = vld [vmem:[%s11] sm:$0x1]
        %v473 = vld [vmem:[%s12] sm:$0x1]
        %v474 = vpack.c.bf16 %v437, %v437
        %v476 = vlaneseq
        %v477 = vshrl.u32 %v476, 7
        %v478 = vsub.s32 0, %v477
        %v479 = vrot.slane %v442, %v478
        %v485 = vunpack.c.l.b16 %v438
        %v486 = vunpack.c.l.b16 %v439
        %v487 = vunpack.c.l.b16 %v440
        %v488 = vunpack.c.l.b16 %v441
        %v489 = vpack.c.b16 %v486, %v485
        %v490 = vpack.c.b16 %v488, %v487
        %vm493 = vcmask 261120
        %v495 = vsel %vm493, %v474, 0
        %497 = vmatprep.subr.bf16.mxu0 0
        %498 = vmatpush1.bf16.msra.mxu0 %v489
        %499 = vmatprep.subr.bf16.mxu0 0
        %500 = vmatpush1.bf16.msra.mxu0 %v490
        %501 = vmatprep.subr.bf16.mxu0 0
        %502 = vmatpush1.bf16.msra.mxu0 0
        %503 = vmatprep.subr.bf16.mxu0 0
        %504 = vmatpush1.bf16.msra.mxu0 0
        %505 = vmatprep.subr.bf16.mxu0 0
        %506 = vmatpush1.bf16.msra.mxu0 0
        %507 = vmatprep.subr.bf16.mxu0 0
        %508 = vmatpush1.bf16.msra.mxu0 0
        %509 = vmatprep.subr.bf16.mxu0 0
        %510 = vmatpush1.bf16.msra.mxu0 0
        %511 = vmatprep.subr.bf16.mxu0 0
        %512 = vmatpush1.bf16.msra.mxu0 0
        %513 = vmatprep.subr.bf16.mxu0 0
        %514 = vmatpush1.bf16.msra.mxu0 0
        %515 = vmatprep.subr.bf16.mxu0 0
        %516 = vmatpush1.bf16.msra.mxu0 0
        %517 = vmatprep.subr.bf16.mxu0 0
        %518 = vmatpush1.bf16.msra.mxu0 0
        %519 = vmatprep.subr.bf16.mxu0 0
        %520 = vmatpush1.bf16.msra.mxu0 0
        %521 = vmatprep.subr.bf16.mxu0 0
        %522 = vmatpush1.bf16.msra.mxu0 0
        %523 = vmatprep.subr.bf16.mxu0 0
        %524 = vmatpush1.bf16.msra.mxu0 0
        %525 = vmatprep.subr.bf16.mxu0 0
        %526 = vmatpush1.bf16.msra.mxu0 0
        %527 = vmatprep.subr.bf16.mxu0 0
        %528 = vmatpush1.bf16.msra.mxu0 0
        %529 = vmatprep.mubr.bf16.mxu0 0
        %530 = vmatmul.mubr.bf16.gmra.mrb[0].mxu0 %v495
        %v531 = vpop.f32.mrb[0].mxu0
        %v532 = vadd.f32 %v479, %v531
        %v533 = vpop.f32.mrb[0].mxu0
        %v534 = vpop.f32.mrb[0].mxu0
        %v535 = vpop.f32.mrb[0].mxu0
        %536 = vdwg.mxu0
        %v537 = vmul.f32 %v532, 0.35355338
        %v538 = vpack.c.bf16 %v537, %v537
        %v539 = vpack.c.bf16 %v532, %v532
        %541 = vrot.lane.b32.xlu0 %v539, 96
        %v542 = vpop.permute.xlu0 %541
        %vm543 = vcmask 64512
        %v545 = vsel %vm543, %v538, 0
        %v548 = vsel %vm543, %v542, 0
        %550 = vmatprep.subr.bf16.mxu0 0
        %551 = vmatpush1.bf16.xpose.msra.mxu0 %v548
        %552 = vmatprep.subr.bf16.mxu0 0
        %553 = vmatpush1.bf16.xpose.msra.mxu0 0
        %554 = vmatprep.subr.bf16.mxu0 0
        %555 = vmatpush1.bf16.xpose.msra.mxu0 0
        %556 = vmatprep.subr.bf16.mxu0 0
        %557 = vmatpush1.bf16.xpose.msra.mxu0 0
        %558 = vmatprep.subr.bf16.mxu0 0
        %559 = vmatpush1.bf16.xpose.msra.mxu0 0
        %560 = vmatprep.subr.bf16.mxu0 0
        %561 = vmatpush1.bf16.xpose.msra.mxu0 0
        %562 = vmatprep.subr.bf16.mxu0 0
        %563 = vmatpush1.bf16.xpose.msra.mxu0 0
        %564 = vmatprep.subr.bf16.mxu0 0
        %565 = vmatpush1.bf16.xpose.msra.mxu0 0
        %566 = vmatprep.subr.bf16.mxu0 0
        %567 = vmatpush1.bf16.xpose.msra.mxu0 0
        %568 = vmatprep.subr.bf16.mxu0 0
        %569 = vmatpush1.bf16.xpose.msra.mxu0 0
        %570 = vmatprep.subr.bf16.mxu0 0
        %571 = vmatpush1.bf16.xpose.msra.mxu0 0
        %572 = vmatprep.subr.bf16.mxu0 0
        %573 = vmatpush1.bf16.xpose.msra.mxu0 0
        %574 = vmatprep.subr.bf16.mxu0 0
        %575 = vmatpush1.bf16.xpose.msra.mxu0 0
        %576 = vmatprep.subr.bf16.mxu0 0
        %577 = vmatpush1.bf16.xpose.msra.mxu0 0
        %578 = vmatprep.subr.bf16.mxu0 0
        %579 = vmatpush1.bf16.xpose.msra.mxu0 0
        %580 = vmatprep.subr.bf16.mxu0 0
        %581 = vmatpush1.bf16.xpose.msra.mxu0 0
        %582 = vmatprep.mubr.bf16.mxu0 0
        %583 = vmatmul.mubr.bf16.gmra.mrb[0].mxu0 %v545
        %v584 = vpop.f32.mrb[0].mxu0
        %v585 = vadd.f32 0.0, %v584
        %v586 = vpop.f32.mrb[0].mxu0
        %v587 = vpop.f32.mrb[0].mxu0
        %v588 = vpop.f32.mrb[0].mxu0
        %589 = vdwg.mxu0
        %v590 = vsel %vm543, %v585, -inf
        %591 = vmax.xlane.f32.xlu0 %v590
        %v592 = vpop.xlane.xlu0 %591
        %v593 = vsub.f32 %v585, %v592
        %v594 = vmul.f32 %v593, 1.442695
        %v595 = vpow.pop %v594
        %v596 = vsel %vm543, %v595, 0.0
        %597 = vadd.xlane.f32.xlu0 %v596
        %v598 = vpop.xlane.xlu0 %597
        %v599 = vrcp.pop %v598
        %v600 = vmul.f32 %v595, %v599
        %v601 = vpack.c.bf16 %v600, %v600
        %602 = vrot.lane.b32.xlu0 %v539, 64
        %v603 = vpop.permute.xlu0 %602
        %v605 = vsel %vm543, %v601, 0
        %vm607 = vcmask 1043456
        %v609 = vsel %vm607, %v603, 0
        %611 = vmatprep.subr.bf16.mxu0 0
        %612 = vmatpush1.bf16.msra.mxu0 %v609
        %613 = vmatprep.subr.bf16.mxu0 0
        %614 = vmatpush1.bf16.msra.mxu0 0
        %615 = vmatprep.subr.bf16.mxu0 0
        %616 = vmatpush1.bf16.msra.mxu0 0
        %617 = vmatprep.subr.bf16.mxu0 0
        %618 = vmatpush1.bf16.msra.mxu0 0
        %619 = vmatprep.subr.bf16.mxu0 0
        %620 = vmatpush1.bf16.msra.mxu0 0
        %621 = vmatprep.subr.bf16.mxu0 0
        %622 = vmatpush1.bf16.msra.mxu0 0
        %623 = vmatprep.subr.bf16.mxu0 0
        %624 = vmatpush1.bf16.msra.mxu0 0
        %625 = vmatprep.subr.bf16.mxu0 0
        %626 = vmatpush1.bf16.msra.mxu0 0
        %627 = vmatprep.subr.bf16.mxu0 0
        %628 = vmatpush1.bf16.msra.mxu0 0
        %629 = vmatprep.subr.bf16.mxu0 0
        %630 = vmatpush1.bf16.msra.mxu0 0
        %631 = vmatprep.subr.bf16.mxu0 0
        %632 = vmatpush1.bf16.msra.mxu0 0
        %633 = vmatprep.subr.bf16.mxu0 0
        %634 = vmatpush1.bf16.msra.mxu0 0
        %635 = vmatprep.subr.bf16.mxu0 0
        %636 = vmatpush1.bf16.msra.mxu0 0
        %637 = vmatprep.subr.bf16.mxu0 0
        %638 = vmatpush1.bf16.msra.mxu0 0
        %639 = vmatprep.subr.bf16.mxu0 0
        %640 = vmatpush1.bf16.msra.mxu0 0
        %641 = vmatprep.subr.bf16.mxu0 0
        %642 = vmatpush1.bf16.msra.mxu0 0
        %643 = vmatprep.mubr.bf16.mxu0 0
        %644 = vmatmul.mubr.bf16.gmra.mrb[0].mxu0 %v605
        %v645 = vpop.f32.mrb[0].mxu0
        %v646 = vadd.f32 0.0, %v645
        %v647 = vpop.f32.mrb[0].mxu0
        %v648 = vpop.f32.mrb[0].mxu0
        %v649 = vpop.f32.mrb[0].mxu0
        %650 = vdwg.mxu0
        %v651 = vpack.c.bf16 %v646, %v646
        %653 = vrot.lane.b32.xlu0 %v538, 120
        %v654 = vpop.permute.xlu0 %653
        %655 = vrot.lane.b32.xlu0 %v539, 88
        %v656 = vpop.permute.xlu0 %655
        %v658 = vsel %vm543, %v654, 0
        %v661 = vsel %vm543, %v656, 0
        %663 = vmatprep.subr.bf16.mxu0 0
        %664 = vmatpush1.bf16.xpose.msra.mxu0 %v661
        %665 = vmatprep.subr.bf16.mxu0 0
        %666 = vmatpush1.bf16.xpose.msra.mxu0 0
        %667 = vmatprep.subr.bf16.mxu0 0
        %668 = vmatpush1.bf16.xpose.msra.mxu0 0
        %669 = vmatprep.subr.bf16.mxu0 0
        %670 = vmatpush1.bf16.xpose.msra.mxu0 0
        %671 = vmatprep.subr.bf16.mxu0 0
        %672 = vmatpush1.bf16.xpose.msra.mxu0 0
        %673 = vmatprep.subr.bf16.mxu0 0
        %674 = vmatpush1.bf16.xpose.msra.mxu0 0
        %675 = vmatprep.subr.bf16.mxu0 0
        %676 = vmatpush1.bf16.xpose.msra.mxu0 0
        %677 = vmatprep.subr.bf16.mxu0 0
        %678 = vmatpush1.bf16.xpose.msra.mxu0 0
        %679 = vmatprep.subr.bf16.mxu0 0
        %680 = vmatpush1.bf16.xpose.msra.mxu0 0
        %681 = vmatprep.subr.bf16.mxu0 0
        %682 = vmatpush1.bf16.xpose.msra.mxu0 0
        %683 = vmatprep.subr.bf16.mxu0 0
        %684 = vmatpush1.bf16.xpose.msra.mxu0 0
        %685 = vmatprep.subr.bf16.mxu0 0
        %686 = vmatpush1.bf16.xpose.msra.mxu0 0
        %687 = vmatprep.subr.bf16.mxu0 0
        %688 = vmatpush1.bf16.xpose.msra.mxu0 0
        %689 = vmatprep.subr.bf16.mxu0 0
        %690 = vmatpush1.bf16.xpose.msra.mxu0 0
        %691 = vmatprep.subr.bf16.mxu0 0
        %692 = vmatpush1.bf16.xpose.msra.mxu0 0
        %693 = vmatprep.subr.bf16.mxu0 0
        %694 = vmatpush1.bf16.xpose.msra.mxu0 0
        %695 = vmatprep.mubr.bf16.mxu0 0
        %696 = vmatmul.mubr.bf16.gmra.mrb[0].mxu0 %v658
        %v697 = vpop.f32.mrb[0].mxu0
        %v698 = vadd.f32 0.0, %v697
        %v699 = vpop.f32.mrb[0].mxu0
        %v700 = vpop.f32.mrb[0].mxu0
        %v701 = vpop.f32.mrb[0].mxu0
        %702 = vdwg.mxu0
        %v703 = vsel %vm543, %v698, -inf
        %704 = vmax.xlane.f32.xlu0 %v703
        %v705 = vpop.xlane.xlu0 %704
        %v706 = vsub.f32 %v698, %v705
        %v707 = vmul.f32 %v706, 1.442695
        %v708 = vpow.pop %v707
        %v709 = vsel %vm543, %v708, 0.0
        %710 = vadd.xlane.f32.xlu0 %v709
        %v711 = vpop.xlane.xlu0 %710
        %v712 = vrcp.pop %v711
        %v713 = vmul.f32 %v708, %v712
        %v714 = vpack.c.bf16 %v713, %v713
        %715 = vrot.lane.b32.xlu0 %v539, 56
        %v716 = vpop.permute.xlu0 %715
        %v718 = vsel %vm543, %v714, 0
        %v721 = vsel %vm607, %v716, 0
        %723 = vmatprep.subr.bf16.mxu0 0
        %724 = vmatpush1.bf16.msra.mxu0 %v721
        %725 = vmatprep.subr.bf16.mxu0 0
        %726 = vmatpush1.bf16.msra.mxu0 0
        %727 = vmatprep.subr.bf16.mxu0 0
        %728 = vmatpush1.bf16.msra.mxu0 0
        %729 = vmatprep.subr.bf16.mxu0 0
        %730 = vmatpush1.bf16.msra.mxu0 0
        %731 = vmatprep.subr.bf16.mxu0 0
        %732 = vmatpush1.bf16.msra.mxu0 0
        %733 = vmatprep.subr.bf16.mxu0 0
        %734 = vmatpush1.bf16.msra.mxu0 0
        %735 = vmatprep.subr.bf16.mxu0 0
        %736 = vmatpush1.bf16.msra.mxu0 0
        %737 = vmatprep.subr.bf16.mxu0 0
        %738 = vmatpush1.bf16.msra.mxu0 0
        %739 = vmatprep.subr.bf16.mxu0 0
        %740 = vmatpush1.bf16.msra.mxu0 0
        %741 = vmatprep.subr.bf16.mxu0 0
        %742 = vmatpush1.bf16.msra.mxu0 0
        %743 = vmatprep.subr.bf16.mxu0 0
        %744 = vmatpush1.bf16.msra.mxu0 0
        %745 = vmatprep.subr.bf16.mxu0 0
        %746 = vmatpush1.bf16.msra.mxu0 0
        %747 = vmatprep.subr.bf16.mxu0 0
        %748 = vmatpush1.bf16.msra.mxu0 0
        %749 = vmatprep.subr.bf16.mxu0 0
        %750 = vmatpush1.bf16.msra.mxu0 0
        %751 = vmatprep.subr.bf16.mxu0 0
        %752 = vmatpush1.bf16.msra.mxu0 0
        %753 = vmatprep.subr.bf16.mxu0 0
        %754 = vmatpush1.bf16.msra.mxu0 0
        %755 = vmatprep.mubr.bf16.mxu0 0
        %756 = vmatmul.mubr.bf16.gmra.mrb[0].mxu0 %v718
        %v757 = vpop.f32.mrb[0].mxu0
        %v758 = vadd.f32 0.0, %v757
        %v759 = vpop.f32.mrb[0].mxu0
        %v760 = vpop.f32.mrb[0].mxu0
        %v761 = vpop.f32.mrb[0].mxu0
        %762 = vdwg.mxu0
        %v763 = vpack.c.bf16 %v758, %v758
        %764 = vrot.lane.b32.xlu0 %v538, 112
        %v765 = vpop.permute.xlu0 %764
        %766 = vrot.lane.b32.xlu0 %v539, 80
        %v767 = vpop.permute.xlu0 %766
        %v769 = vsel %vm543, %v765, 0
        %v772 = vsel %vm543, %v767, 0
        %774 = vmatprep.subr.bf16.mxu0 0
        %775 = vmatpush1.bf16.xpose.msra.mxu0 %v772
        %776 = vmatprep.subr.bf16.mxu0 0
        %777 = vmatpush1.bf16.xpose.msra.mxu0 0
        %778 = vmatprep.subr.bf16.mxu0 0
        %779 = vmatpush1.bf16.xpose.msra.mxu0 0
        %780 = vmatprep.subr.bf16.mxu0 0
        %781 = vmatpush1.bf16.xpose.msra.mxu0 0
        %782 = vmatprep.subr.bf16.mxu0 0
        %783 = vmatpush1.bf16.xpose.msra.mxu0 0
        %784 = vmatprep.subr.bf16.mxu0 0
        %785 = vmatpush1.bf16.xpose.msra.mxu0 0
        %786 = vmatprep.subr.bf16.mxu0 0
        %787 = vmatpush1.bf16.xpose.msra.mxu0 0
        %788 = vmatprep.subr.bf16.mxu0 0
        %789 = vmatpush1.bf16.xpose.msra.mxu0 0
        %790 = vmatprep.subr.bf16.mxu0 0
        %791 = vmatpush1.bf16.xpose.msra.mxu0 0
        %792 = vmatprep.subr.bf16.mxu0 0
        %793 = vmatpush1.bf16.xpose.msra.mxu0 0
        %794 = vmatprep.subr.bf16.mxu0 0
        %795 = vmatpush1.bf16.xpose.msra.mxu0 0
        %796 = vmatprep.subr.bf16.mxu0 0
        %797 = vmatpush1.bf16.xpose.msra.mxu0 0
        %798 = vmatprep.subr.bf16.mxu0 0
        %799 = vmatpush1.bf16.xpose.msra.mxu0 0
        %800 = vmatprep.subr.bf16.mxu0 0
        %801 = vmatpush1.bf16.xpose.msra.mxu0 0
        %802 = vmatprep.subr.bf16.mxu0 0
        %803 = vmatpush1.bf16.xpose.msra.mxu0 0
        %804 = vmatprep.subr.bf16.mxu0 0
        %805 = vmatpush1.bf16.xpose.msra.mxu0 0
        %806 = vmatprep.mubr.bf16.mxu0 0
        %807 = vmatmul.mubr.bf16.gmra.mrb[0].mxu0 %v769
        %v808 = vpop.f32.mrb[0].mxu0
        %v809 = vadd.f32 0.0, %v808
        %v810 = vpop.f32.mrb[0].mxu0
        %v811 = vpop.f32.mrb[0].mxu0
        %v812 = vpop.f32.mrb[0].mxu0
        %813 = vdwg.mxu0
        %v814 = vsel %vm543, %v809, -inf
        %815 = vmax.xlane.f32.xlu0 %v814
        %v816 = vpop.xlane.xlu0 %815
        %v817 = vsub.f32 %v809, %v816
        %v818 = vmul.f32 %v817, 1.442695
        %v819 = vpow.pop %v818
        %v820 = vsel %vm543, %v819, 0.0
        %821 = vadd.xlane.f32.xlu0 %v820
        %v822 = vpop.xlane.xlu0 %821
        %v823 = vrcp.pop %v822
        %v824 = vmul.f32 %v819, %v823
        %v825 = vpack.c.bf16 %v824, %v824
        %826 = vrot.lane.b32.xlu0 %v539, 48
        %v827 = vpop.permute.xlu0 %826
        %v829 = vsel %vm543, %v825, 0
        %v832 = vsel %vm607, %v827, 0
        %834 = vmatprep.subr.bf16.mxu0 0
        %835 = vmatpush1.bf16.msra.mxu0 %v832
        %836 = vmatprep.subr.bf16.mxu0 0
        %837 = vmatpush1.bf16.msra.mxu0 0
        %838 = vmatprep.subr.bf16.mxu0 0
        %839 = vmatpush1.bf16.msra.mxu0 0
        %840 = vmatprep.subr.bf16.mxu0 0
        %841 = vmatpush1.bf16.msra.mxu0 0
        %842 = vmatprep.subr.bf16.mxu0 0
        %843 = vmatpush1.bf16.msra.mxu0 0
        %844 = vmatprep.subr.bf16.mxu0 0
        %845 = vmatpush1.bf16.msra.mxu0 0
        %846 = vmatprep.subr.bf16.mxu0 0
        %847 = vmatpush1.bf16.msra.mxu0 0
        %848 = vmatprep.subr.bf16.mxu0 0
        %849 = vmatpush1.bf16.msra.mxu0 0
        %850 = vmatprep.subr.bf16.mxu0 0
        %851 = vmatpush1.bf16.msra.mxu0 0
        %852 = vmatprep.subr.bf16.mxu0 0
        %853 = vmatpush1.bf16.msra.mxu0 0
        %854 = vmatprep.subr.bf16.mxu0 0
        %855 = vmatpush1.bf16.msra.mxu0 0
        %856 = vmatprep.subr.bf16.mxu0 0
        %857 = vmatpush1.bf16.msra.mxu0 0
        %858 = vmatprep.subr.bf16.mxu0 0
        %859 = vmatpush1.bf16.msra.mxu0 0
        %860 = vmatprep.subr.bf16.mxu0 0
        %861 = vmatpush1.bf16.msra.mxu0 0
        %862 = vmatprep.subr.bf16.mxu0 0
        %863 = vmatpush1.bf16.msra.mxu0 0
        %864 = vmatprep.subr.bf16.mxu0 0
        %865 = vmatpush1.bf16.msra.mxu0 0
        %866 = vmatprep.mubr.bf16.mxu0 0
        %867 = vmatmul.mubr.bf16.gmra.mrb[0].mxu0 %v829
        %v868 = vpop.f32.mrb[0].mxu0
        %v869 = vadd.f32 0.0, %v868
        %v870 = vpop.f32.mrb[0].mxu0
        %v871 = vpop.f32.mrb[0].mxu0
        %v872 = vpop.f32.mrb[0].mxu0
        %873 = vdwg.mxu0
        %v874 = vpack.c.bf16 %v869, %v869
        %875 = vrot.lane.b32.xlu0 %v538, 104
        %v876 = vpop.permute.xlu0 %875
        %877 = vrot.lane.b32.xlu0 %v539, 72
        %v878 = vpop.permute.xlu0 %877
        %v880 = vsel %vm543, %v876, 0
        %v883 = vsel %vm543, %v878, 0
        %885 = vmatprep.subr.bf16.mxu0 0
        %886 = vmatpush1.bf16.xpose.msra.mxu0 %v883
        %887 = vmatprep.subr.bf16.mxu0 0
        %888 = vmatpush1.bf16.xpose.msra.mxu0 0
        %889 = vmatprep.subr.bf16.mxu0 0
        %890 = vmatpush1.bf16.xpose.msra.mxu0 0
        %891 = vmatprep.subr.bf16.mxu0 0
        %892 = vmatpush1.bf16.xpose.msra.mxu0 0
        %893 = vmatprep.subr.bf16.mxu0 0
        %894 = vmatpush1.bf16.xpose.msra.mxu0 0
        %895 = vmatprep.subr.bf16.mxu0 0
        %896 = vmatpush1.bf16.xpose.msra.mxu0 0
        %897 = vmatprep.subr.bf16.mxu0 0
        %898 = vmatpush1.bf16.xpose.msra.mxu0 0
        %899 = vmatprep.subr.bf16.mxu0 0
        %900 = vmatpush1.bf16.xpose.msra.mxu0 0
        %901 = vmatprep.subr.bf16.mxu0 0
        %902 = vmatpush1.bf16.xpose.msra.mxu0 0
        %903 = vmatprep.subr.bf16.mxu0 0
        %904 = vmatpush1.bf16.xpose.msra.mxu0 0
        %905 = vmatprep.subr.bf16.mxu0 0
        %906 = vmatpush1.bf16.xpose.msra.mxu0 0
        %907 = vmatprep.subr.bf16.mxu0 0
        %908 = vmatpush1.bf16.xpose.msra.mxu0 0
        %909 = vmatprep.subr.bf16.mxu0 0
        %910 = vmatpush1.bf16.xpose.msra.mxu0 0
        %911 = vmatprep.subr.bf16.mxu0 0
        %912 = vmatpush1.bf16.xpose.msra.mxu0 0
        %913 = vmatprep.subr.bf16.mxu0 0
        %914 = vmatpush1.bf16.xpose.msra.mxu0 0
        %915 = vmatprep.subr.bf16.mxu0 0
        %916 = vmatpush1.bf16.xpose.msra.mxu0 0
        %917 = vmatprep.mubr.bf16.mxu0 0
        %918 = vmatmul.mubr.bf16.gmra.mrb[0].mxu0 %v880
        %v919 = vpop.f32.mrb[0].mxu0
        %v920 = vadd.f32 0.0, %v919
        %v921 = vpop.f32.mrb[0].mxu0
        %v922 = vpop.f32.mrb[0].mxu0
        %v923 = vpop.f32.mrb[0].mxu0
        %924 = vdwg.mxu0
        %v925 = vsel %vm543, %v920, -inf
        %926 = vmax.xlane.f32.xlu0 %v925
        %v927 = vpop.xlane.xlu0 %926
        %v928 = vsub.f32 %v920, %v927
        %v929 = vmul.f32 %v928, 1.442695
        %v930 = vpow.pop %v929
        %v931 = vsel %vm543, %v930, 0.0
        %932 = vadd.xlane.f32.xlu0 %v931
        %v933 = vpop.xlane.xlu0 %932
        %v934 = vrcp.pop %v933
        %v935 = vmul.f32 %v930, %v934
        %v936 = vpack.c.bf16 %v935, %v935
        %937 = vrot.lane.b32.xlu0 %v539, 40
        %v938 = vpop.permute.xlu0 %937
        %v940 = vsel %vm543, %v936, 0
        %v943 = vsel %vm607, %v938, 0
        %945 = vmatprep.subr.bf16.mxu0 0
        %946 = vmatpush1.bf16.msra.mxu0 %v943
        %947 = vmatprep.subr.bf16.mxu0 0
        %948 = vmatpush1.bf16.msra.mxu0 0
        %949 = vmatprep.subr.bf16.mxu0 0
        %950 = vmatpush1.bf16.msra.mxu0 0
        %951 = vmatprep.subr.bf16.mxu0 0
        %952 = vmatpush1.bf16.msra.mxu0 0
        %953 = vmatprep.subr.bf16.mxu0 0
        %954 = vmatpush1.bf16.msra.mxu0 0
        %955 = vmatprep.subr.bf16.mxu0 0
        %956 = vmatpush1.bf16.msra.mxu0 0
        %957 = vmatprep.subr.bf16.mxu0 0
        %958 = vmatpush1.bf16.msra.mxu0 0
        %959 = vmatprep.subr.bf16.mxu0 0
        %960 = vmatpush1.bf16.msra.mxu0 0
        %961 = vmatprep.subr.bf16.mxu0 0
        %962 = vmatpush1.bf16.msra.mxu0 0
        %963 = vmatprep.subr.bf16.mxu0 0
        %964 = vmatpush1.bf16.msra.mxu0 0
        %965 = vmatprep.subr.bf16.mxu0 0
        %966 = vmatpush1.bf16.msra.mxu0 0
        %967 = vmatprep.subr.bf16.mxu0 0
        %968 = vmatpush1.bf16.msra.mxu0 0
        %969 = vmatprep.subr.bf16.mxu0 0
        %970 = vmatpush1.bf16.msra.mxu0 0
        %971 = vmatprep.subr.bf16.mxu0 0
        %972 = vmatpush1.bf16.msra.mxu0 0
        %973 = vmatprep.subr.bf16.mxu0 0
        %974 = vmatpush1.bf16.msra.mxu0 0
        %975 = vmatprep.subr.bf16.mxu0 0
        %976 = vmatpush1.bf16.msra.mxu0 0
        %977 = vmatprep.mubr.bf16.mxu0 0
        %978 = vmatmul.mubr.bf16.gmra.mrb[0].mxu0 %v940
        %v979 = vpop.f32.mrb[0].mxu0
        %v980 = vadd.f32 0.0, %v979
        %v981 = vpop.f32.mrb[0].mxu0
        %v982 = vpop.f32.mrb[0].mxu0
        %v983 = vpop.f32.mrb[0].mxu0
        %984 = vdwg.mxu0
        %v985 = vpack.c.bf16 %v980, %v980
        %987 = vrot.lane.b32.xlu0 %v763, 8
        %v988 = vpop.permute.xlu0 %987
        %990 = vrot.lane.b32.xlu0 %v874, 16
        %v991 = vpop.permute.xlu0 %990
        %993 = vrot.lane.b32.xlu0 %v985, 24
        %v994 = vpop.permute.xlu0 %993
        %v997 = vsel %vm543, %v651, %v988
        %vm998 = vcmask 130048
        %v1000 = vsel %vm998, %v997, %v991
        %vm1001 = vcmask 195584
        %v1003 = vsel %vm1001, %v1000, %v994
        %v1005 = vlaneseq
        %v1006 = vshrl.u32 %v1005, 7
        %v1007 = vsub.s32 0, %v1006
        %v1008 = vrot.slane %v447, %v1007
        %v1014 = vunpack.c.l.b16 %v443
        %v1015 = vunpack.c.l.b16 %v444
        %v1016 = vunpack.c.l.b16 %v445
        %v1017 = vunpack.c.l.b16 %v446
        %v1018 = vpack.c.b16 %v1015, %v1014
        %v1019 = vpack.c.b16 %v1017, %v1016
        %v1022 = vsel %vm493, %v1003, 0
        %1024 = vmatprep.subr.bf16.mxu0 0
        %1025 = vmatpush1.bf16.msra.mxu0 %v1018
        %1026 = vmatprep.subr.bf16.mxu0 0
        %1027 = vmatpush1.bf16.msra.mxu0 %v1019
        %1028 = vmatprep.subr.bf16.mxu0 0
        %1029 = vmatpush1.bf16.msra.mxu0 0
        %1030 = vmatprep.subr.bf16.mxu0 0
        %1031 = vmatpush1.bf16.msra.mxu0 0
        %1032 = vmatprep.subr.bf16.mxu0 0
        %1033 = vmatpush1.bf16.msra.mxu0 0
        %1034 = vmatprep.subr.bf16.mxu0 0
        %1035 = vmatpush1.bf16.msra.mxu0 0
        %1036 = vmatprep.subr.bf16.mxu0 0
        %1037 = vmatpush1.bf16.msra.mxu0 0
        %1038 = vmatprep.subr.bf16.mxu0 0
        %1039 = vmatpush1.bf16.msra.mxu0 0
        %1040 = vmatprep.subr.bf16.mxu0 0
        %1041 = vmatpush1.bf16.msra.mxu0 0
        %1042 = vmatprep.subr.bf16.mxu0 0
        %1043 = vmatpush1.bf16.msra.mxu0 0
        %1044 = vmatprep.subr.bf16.mxu0 0
        %1045 = vmatpush1.bf16.msra.mxu0 0
        %1046 = vmatprep.subr.bf16.mxu0 0
        %1047 = vmatpush1.bf16.msra.mxu0 0
        %1048 = vmatprep.subr.bf16.mxu0 0
        %1049 = vmatpush1.bf16.msra.mxu0 0
        %1050 = vmatprep.subr.bf16.mxu0 0
        %1051 = vmatpush1.bf16.msra.mxu0 0
        %1052 = vmatprep.subr.bf16.mxu0 0
        %1053 = vmatpush1.bf16.msra.mxu0 0
        %1054 = vmatprep.subr.bf16.mxu0 0
        %1055 = vmatpush1.bf16.msra.mxu0 0
        %1056 = vmatprep.mubr.bf16.mxu0 0
        %1057 = vmatmul.mubr.bf16.gmra.mrb[0].mxu0 %v1022
        %v1058 = vpop.f32.mrb[0].mxu0
        %v1059 = vadd.f32 %v1008, %v1058
        %v1060 = vpop.f32.mrb[0].mxu0
        %v1061 = vpop.f32.mrb[0].mxu0
        %v1062 = vpop.f32.mrb[0].mxu0
        %1063 = vdwg.mxu0
        %v1064 = vadd.f32 %v1059, %v437
        %v1065 = vsel %vm493, %v1064, 0.0
        %1066 = vadd.xlane.f32.xlu0 %v1065
        %v1067 = vpop.xlane.xlu0 %1066
        %v1068 = vrcp.pop 32.0
        %v1069 = vmul.f32 %v1067, %v1068
        %v1070 = vsub.f32 %v1064, %v1069
        %v1071 = vmul.f32 %v1070, %v1070
        %v1072 = vsel %vm493, %v1071, 0.0
        %1073 = vadd.xlane.f32.xlu0 %v1072
        %v1074 = vpop.xlane.xlu0 %1073
        %v1075 = vmul.f32 %v1074, %v1068
        %v1076 = vadd.f32 %v1075, 1e-05
        %v1077 = vrsqrt.pop %v1076
        %v1078 = vmul.f32 %v1070, %v1077
        %v1080 = vlaneseq
        %v1081 = vshrl.u32 %v1080, 7
        %v1082 = vsub.s32 0, %v1081
        %v1083 = vrot.slane %v470, %v1082
        %v1085 = vmul.f32 %v1078, %v1083
        %v1087 = vlaneseq
        %v1088 = vshrl.u32 %v1087, 7
        %v1089 = vsub.s32 0, %v1088
        %v1090 = vrot.slane %v471, %v1089
        %v1092 = vadd.f32 %v1085, %v1090
        %v1093 = vpack.c.bf16 %v1092, %v1092
        %v1095 = vlaneseq
        %v1096 = vshrl.u32 %v1095, 7
        %v1097 = vsub.s32 0, %v1096
        %v1098 = vrot.slane %v452, %v1097
        %v1104 = vunpack.c.l.b16 %v448
        %v1105 = vunpack.c.l.b16 %v449
        %v1106 = vunpack.c.l.b16 %v450
        %v1107 = vunpack.c.l.b16 %v451
        %v1108 = vpack.c.b16 %v1105, %v1104
        %v1109 = vpack.c.b16 %v1107, %v1106
        %v1113 = vsel %vm493, %v1093, 0
        %1115 = vmatprep.subr.bf16.mxu0 0
        %1116 = vmatpush1.bf16.msra.mxu0 %v1108
        %1117 = vmatprep.subr.bf16.mxu0 0
        %1118 = vmatpush1.bf16.msra.mxu0 %v1109
        %1119 = vmatprep.subr.bf16.mxu0 0
        %1120 = vmatpush1.bf16.msra.mxu0 0
        %1121 = vmatprep.subr.bf16.mxu0 0
        %1122 = vmatpush1.bf16.msra.mxu0 0
        %1123 = vmatprep.subr.bf16.mxu0 0
        %1124 = vmatpush1.bf16.msra.mxu0 0
        %1125 = vmatprep.subr.bf16.mxu0 0
        %1126 = vmatpush1.bf16.msra.mxu0 0
        %1127 = vmatprep.subr.bf16.mxu0 0
        %1128 = vmatpush1.bf16.msra.mxu0 0
        %1129 = vmatprep.subr.bf16.mxu0 0
        %1130 = vmatpush1.bf16.msra.mxu0 0
        %1131 = vmatprep.subr.bf16.mxu0 0
        %1132 = vmatpush1.bf16.msra.mxu0 0
        %1133 = vmatprep.subr.bf16.mxu0 0
        %1134 = vmatpush1.bf16.msra.mxu0 0
        %1135 = vmatprep.subr.bf16.mxu0 0
        %1136 = vmatpush1.bf16.msra.mxu0 0
        %1137 = vmatprep.subr.bf16.mxu0 0
        %1138 = vmatpush1.bf16.msra.mxu0 0
        %1139 = vmatprep.subr.bf16.mxu0 0
        %1140 = vmatpush1.bf16.msra.mxu0 0
        %1141 = vmatprep.subr.bf16.mxu0 0
        %1142 = vmatpush1.bf16.msra.mxu0 0
        %1143 = vmatprep.subr.bf16.mxu0 0
        %1144 = vmatpush1.bf16.msra.mxu0 0
        %1145 = vmatprep.subr.bf16.mxu0 0
        %1146 = vmatpush1.bf16.msra.mxu0 0
        %1147 = vmatprep.mubr.bf16.mxu0 0
        %1148 = vmatmul.mubr.bf16.gmra.mrb[0].mxu0 %v1113
        %v1149 = vpop.f32.mrb[0].mxu0
        %v1150 = vadd.f32 %v1098, %v1149
        %v1151 = vpop.f32.mrb[0].mxu0
        %v1152 = vpop.f32.mrb[0].mxu0
        %v1153 = vpop.f32.mrb[0].mxu0
        %1154 = vdwg.mxu0
        %v1155 = vmax.f32 %v1150, 0.0
        %v1156 = vpack.c.bf16 %v1155, %v1155
        %v1158 = vlaneseq
        %v1159 = vshrl.u32 %v1158, 7
        %v1160 = vsub.s32 0, %v1159
        %v1161 = vrot.slane %v469, %v1160
        %v1179 = vunpack.c.l.b16 %v453
        %v1180 = vunpack.c.l.b16 %v454
        %v1181 = vunpack.c.l.b16 %v455
        %v1182 = vunpack.c.l.b16 %v456
        %v1183 = vunpack.c.l.b16 %v457
        %v1184 = vunpack.c.l.b16 %v458
        %v1185 = vunpack.c.l.b16 %v459
        %v1186 = vunpack.c.l.b16 %v460
        %v1187 = vunpack.c.l.b16 %v461
        %v1188 = vunpack.c.l.b16 %v462
        %v1189 = vunpack.c.l.b16 %v463
        %v1190 = vunpack.c.l.b16 %v464
        %v1191 = vunpack.c.l.b16 %v465
        %v1192 = vunpack.c.l.b16 %v466
        %v1193 = vunpack.c.l.b16 %v467
        %v1194 = vunpack.c.l.b16 %v468
        %v1195 = vpack.c.b16 %v1180, %v1179
        %v1196 = vpack.c.b16 %v1182, %v1181
        %v1197 = vpack.c.b16 %v1184, %v1183
        %v1198 = vpack.c.b16 %v1186, %v1185
        %v1199 = vpack.c.b16 %v1188, %v1187
        %v1200 = vpack.c.b16 %v1190, %v1189
        %v1201 = vpack.c.b16 %v1192, %v1191
        %v1202 = vpack.c.b16 %v1194, %v1193
        %1211 = vmatprep.subr.bf16.mxu0 0
        %1212 = vmatpush1.bf16.msra.mxu0 %v1195
        %1213 = vmatprep.subr.bf16.mxu0 0
        %1214 = vmatpush1.bf16.msra.mxu0 %v1196
        %1215 = vmatprep.subr.bf16.mxu0 0
        %1216 = vmatpush1.bf16.msra.mxu0 %v1197
        %1217 = vmatprep.subr.bf16.mxu0 0
        %1218 = vmatpush1.bf16.msra.mxu0 %v1198
        %1219 = vmatprep.subr.bf16.mxu0 0
        %1220 = vmatpush1.bf16.msra.mxu0 %v1199
        %1221 = vmatprep.subr.bf16.mxu0 0
        %1222 = vmatpush1.bf16.msra.mxu0 %v1200
        %1223 = vmatprep.subr.bf16.mxu0 0
        %1224 = vmatpush1.bf16.msra.mxu0 %v1201
        %1225 = vmatprep.subr.bf16.mxu0 0
        %1226 = vmatpush1.bf16.msra.mxu0 %v1202
        %1227 = vmatprep.subr.bf16.mxu0 0
        %1228 = vmatpush1.bf16.msra.mxu0 0
        %1229 = vmatprep.subr.bf16.mxu0 0
        %1230 = vmatpush1.bf16.msra.mxu0 0
        %1231 = vmatprep.subr.bf16.mxu0 0
        %1232 = vmatpush1.bf16.msra.mxu0 0
        %1233 = vmatprep.subr.bf16.mxu0 0
        %1234 = vmatpush1.bf16.msra.mxu0 0
        %1235 = vmatprep.subr.bf16.mxu0 0
        %1236 = vmatpush1.bf16.msra.mxu0 0
        %1237 = vmatprep.subr.bf16.mxu0 0
        %1238 = vmatpush1.bf16.msra.mxu0 0
        %1239 = vmatprep.subr.bf16.mxu0 0
        %1240 = vmatpush1.bf16.msra.mxu0 0
        %1241 = vmatprep.subr.bf16.mxu0 0
        %1242 = vmatpush1.bf16.msra.mxu0 0
        %1243 = vmatprep.mubr.bf16.mxu0 0
        %1244 = vmatmul.mubr.bf16.gmra.mrb[0].mxu0 %v1156
        %v1245 = vpop.f32.mrb[0].mxu0
        %v1246 = vadd.f32 %v1161, %v1245
        %v1247 = vpop.f32.mrb[0].mxu0
        %v1248 = vpop.f32.mrb[0].mxu0
        %v1249 = vpop.f32.mrb[0].mxu0
        %1250 = vdwg.mxu0
        %v1251 = vadd.f32 %v1246, %v1092
        %v1252 = vsel %vm493, %v1251, 0.0
        %1253 = vadd.xlane.f32.xlu0 %v1252
        %v1254 = vpop.xlane.xlu0 %1253
        %v1255 = vmul.f32 %v1254, %v1068
        %v1256 = vsub.f32 %v1251, %v1255
        %v1257 = vmul.f32 %v1256, %v1256
        %v1258 = vsel %vm493, %v1257, 0.0
        %1259 = vadd.xlane.f32.xlu0 %v1258
        %v1260 = vpop.xlane.xlu0 %1259
        %v1261 = vmul.f32 %v1260, %v1068
        %v1262 = vadd.f32 %v1261, 1e-05
        %v1263 = vrsqrt.pop %v1262
        %v1264 = vmul.f32 %v1256, %v1263
        %v1266 = vlaneseq
        %v1267 = vshrl.u32 %v1266, 7
        %v1268 = vsub.s32 0, %v1267
        %v1269 = vrot.slane %v472, %v1268
        %v1271 = vmul.f32 %v1264, %v1269
        %v1273 = vlaneseq
        %v1274 = vshrl.u32 %v1273, 7
        %v1275 = vsub.s32 0, %v1274
        %v1276 = vrot.slane %v473, %v1275
        %v1278 = vadd.f32 %v1271, %v1276
        %v1279 = vpack.c.bf16 %v1278, %v1278
        %v1281 = vsel %vm493, %v1279, 0
        %1283 = vmatprep.subr.bf16.mxu0 0
        %1284 = vmatpush1.bf16.msra.mxu0 %v489
        %1285 = vmatprep.subr.bf16.mxu0 0
        %1286 = vmatpush1.bf16.msra.mxu0 %v490
        %1287 = vmatprep.subr.bf16.mxu0 0
        %1288 = vmatpush1.bf16.msra.mxu0 0
        %1289 = vmatprep.subr.bf16.mxu0 0
        %1290 = vmatpush1.bf16.msra.mxu0 0
        %1291 = vmatprep.subr.bf16.mxu0 0
        %1292 = vmatpush1.bf16.msra.mxu0 0
        %1293 = vmatprep.subr.bf16.mxu0 0
        %1294 = vmatpush1.bf16.msra.mxu0 0
        %1295 = vmatprep.subr.bf16.mxu0 0
        %1296 = vmatpush1.bf16.msra.mxu0 0
        %1297 = vmatprep.subr.bf16.mxu0 0
        %1298 = vmatpush1.bf16.msra.mxu0 0
        %1299 = vmatprep.subr.bf16.mxu0 0
        %1300 = vmatpush1.bf16.msra.mxu0 0
        %1301 = vmatprep.subr.bf16.mxu0 0
        %1302 = vmatpush1.bf16.msra.mxu0 0
        %1303 = vmatprep.subr.bf16.mxu0 0
        %1304 = vmatpush1.bf16.msra.mxu0 0
        %1305 = vmatprep.subr.bf16.mxu0 0
        %1306 = vmatpush1.bf16.msra.mxu0 0
        %1307 = vmatprep.subr.bf16.mxu0 0
        %1308 = vmatpush1.bf16.msra.mxu0 0
        %1309 = vmatprep.subr.bf16.mxu0 0
        %1310 = vmatpush1.bf16.msra.mxu0 0
        %1311 = vmatprep.subr.bf16.mxu0 0
        %1312 = vmatpush1.bf16.msra.mxu0 0
        %1313 = vmatprep.subr.bf16.mxu0 0
        %1314 = vmatpush1.bf16.msra.mxu0 0
        %1315 = vmatprep.mubr.bf16.mxu0 0
        %1316 = vmatmul.mubr.bf16.gmra.mrb[0].mxu0 %v1281
        %v1317 = vpop.f32.mrb[0].mxu0
        %v1318 = vadd.f32 %v479, %v1317
        %v1319 = vpop.f32.mrb[0].mxu0
        %v1320 = vpop.f32.mrb[0].mxu0
        %v1321 = vpop.f32.mrb[0].mxu0
        %1322 = vdwg.mxu0
        %v1323 = vmul.f32 %v1318, 0.35355338
        %v1324 = vpack.c.bf16 %v1323, %v1323
        %v1325 = vpack.c.bf16 %v1318, %v1318
        %1327 = vrot.lane.b32.xlu0 %v1325, 96
        %v1328 = vpop.permute.xlu0 %1327
        %v1330 = vsel %vm543, %v1324, 0
        %v1333 = vsel %vm543, %v1328, 0
        %1335 = vmatprep.subr.bf16.mxu0 0
        %1336 = vmatpush1.bf16.xpose.msra.mxu0 %v1333
        %1337 = vmatprep.subr.bf16.mxu0 0
        %1338 = vmatpush1.bf16.xpose.msra.mxu0 0
        %1339 = vmatprep.subr.bf16.mxu0 0
        %1340 = vmatpush1.bf16.xpose.msra.mxu0 0
        %1341 = vmatprep.subr.bf16.mxu0 0
        %1342 = vmatpush1.bf16.xpose.msra.mxu0 0
        %1343 = vmatprep.subr.bf16.mxu0 0
        %1344 = vmatpush1.bf16.xpose.msra.mxu0 0
        %1345 = vmatprep.subr.bf16.mxu0 0
        %1346 = vmatpush1.bf16.xpose.msra.mxu0 0
        %1347 = vmatprep.subr.bf16.mxu0 0
        %1348 = vmatpush1.bf16.xpose.msra.mxu0 0
        %1349 = vmatprep.subr.bf16.mxu0 0
        %1350 = vmatpush1.bf16.xpose.msra.mxu0 0
        %1351 = vmatprep.subr.bf16.mxu0 0
        %1352 = vmatpush1.bf16.xpose.msra.mxu0 0
        %1353 = vmatprep.subr.bf16.mxu0 0
        %1354 = vmatpush1.bf16.xpose.msra.mxu0 0
        %1355 = vmatprep.subr.bf16.mxu0 0
        %1356 = vmatpush1.bf16.xpose.msra.mxu0 0
        %1357 = vmatprep.subr.bf16.mxu0 0
        %1358 = vmatpush1.bf16.xpose.msra.mxu0 0
        %1359 = vmatprep.subr.bf16.mxu0 0
        %1360 = vmatpush1.bf16.xpose.msra.mxu0 0
        %1361 = vmatprep.subr.bf16.mxu0 0
        %1362 = vmatpush1.bf16.xpose.msra.mxu0 0
        %1363 = vmatprep.subr.bf16.mxu0 0
        %1364 = vmatpush1.bf16.xpose.msra.mxu0 0
        %1365 = vmatprep.subr.bf16.mxu0 0
        %1366 = vmatpush1.bf16.xpose.msra.mxu0 0
        %1367 = vmatprep.mubr.bf16.mxu0 0
        %1368 = vmatmul.mubr.bf16.gmra.mrb[0].mxu0 %v1330
        %v1369 = vpop.f32.mrb[0].mxu0
        %v1370 = vadd.f32 0.0, %v1369
        %v1371 = vpop.f32.mrb[0].mxu0
        %v1372 = vpop.f32.mrb[0].mxu0
        %v1373 = vpop.f32.mrb[0].mxu0
        %1374 = vdwg.mxu0
        %v1375 = vsel %vm543, %v1370, -inf
        %1376 = vmax.xlane.f32.xlu0 %v1375
        %v1377 = vpop.xlane.xlu0 %1376
        %v1378 = vsub.f32 %v1370, %v1377
        %v1379 = vmul.f32 %v1378, 1.442695
        %v1380 = vpow.pop %v1379
        %v1381 = vsel %vm543, %v1380, 0.0
        %1382 = vadd.xlane.f32.xlu0 %v1381
        %v1383 = vpop.xlane.xlu0 %1382
        %v1384 = vrcp.pop %v1383
        %v1385 = vmul.f32 %v1380, %v1384
        %v1386 = vpack.c.bf16 %v1385, %v1385
        %1387 = vrot.lane.b32.xlu0 %v1325, 64
        %v1388 = vpop.permute.xlu0 %1387
        %v1390 = vsel %vm543, %v1386, 0
        %v1393 = vsel %vm607, %v1388, 0
        %1395 = vmatprep.subr.bf16.mxu0 0
        %1396 = vmatpush1.bf16.msra.mxu0 %v1393
        %1397 = vmatprep.subr.bf16.mxu0 0
        %1398 = vmatpush1.bf16.msra.mxu0 0
        %1399 = vmatprep.subr.bf16.mxu0 0
        %1400 = vmatpush1.bf16.msra.mxu0 0
        %1401 = vmatprep.subr.bf16.mxu0 0
        %1402 = vmatpush1.bf16.msra.mxu0 0
        %1403 = vmatprep.subr.bf16.mxu0 0
        %1404 = vmatpush1.bf16.msra.mxu0 0
        %1405 = vmatprep.subr.bf16.mxu0 0
        %1406 = vmatpush1.bf16.msra.mxu0 0
        %1407 = vmatprep.subr.bf16.mxu0 0
        %1408 = vmatpush1.bf16.msra.mxu0 0
        %1409 = vmatprep.subr.bf16.mxu0 0
        %1410 = vmatpush1.bf16.msra.mxu0 0
        %1411 = vmatprep.subr.bf16.mxu0 0
        %1412 = vmatpush1.bf16.msra.mxu0 0
        %1413 = vmatprep.subr.bf16.mxu0 0
        %1414 = vmatpush1.bf16.msra.mxu0 0
        %1415 = vmatprep.subr.bf16.mxu0 0
        %1416 = vmatpush1.bf16.msra.mxu0 0
        %1417 = vmatprep.subr.bf16.mxu0 0
        %1418 = vmatpush1.bf16.msra.mxu0 0
        %1419 = vmatprep.subr.bf16.mxu0 0
        %1420 = vmatpush1.bf16.msra.mxu0 0
        %1421 = vmatprep.subr.bf16.mxu0 0
        %1422 = vmatpush1.bf16.msra.mxu0 0
        %1423 = vmatprep.subr.bf16.mxu0 0
        %1424 = vmatpush1.bf16.msra.mxu0 0
        %1425 = vmatprep.subr.bf16.mxu0 0
        %1426 = vmatpush1.bf16.msra.mxu0 0
        %1427 = vmatprep.mubr.bf16.mxu0 0
        %1428 = vmatmul.mubr.bf16.gmra.mrb[0].mxu0 %v1390
        %v1429 = vpop.f32.mrb[0].mxu0
        %v1430 = vadd.f32 0.0, %v1429
        %v1431 = vpop.f32.mrb[0].mxu0
        %v1432 = vpop.f32.mrb[0].mxu0
        %v1433 = vpop.f32.mrb[0].mxu0
        %1434 = vdwg.mxu0
        %v1435 = vpack.c.bf16 %v1430, %v1430
        %1437 = vrot.lane.b32.xlu0 %v1324, 120
        %v1438 = vpop.permute.xlu0 %1437
        %1439 = vrot.lane.b32.xlu0 %v1325, 88
        %v1440 = vpop.permute.xlu0 %1439
        %v1442 = vsel %vm543, %v1438, 0
        %v1445 = vsel %vm543, %v1440, 0
        %1447 = vmatprep.subr.bf16.mxu0 0
        %1448 = vmatpush1.bf16.xpose.msra.mxu0 %v1445
        %1449 = vmatprep.subr.bf16.mxu0 0
        %1450 = vmatpush1.bf16.xpose.msra.mxu0 0
        %1451 = vmatprep.subr.bf16.mxu0 0
        %1452 = vmatpush1.bf16.xpose.msra.mxu0 0
        %1453 = vmatprep.subr.bf16.mxu0 0
        %1454 = vmatpush1.bf16.xpose.msra.mxu0 0
        %1455 = vmatprep.subr.bf16.mxu0 0
        %1456 = vmatpush1.bf16.xpose.msra.mxu0 0
        %1457 = vmatprep.subr.bf16.mxu0 0
        %1458 = vmatpush1.bf16.xpose.msra.mxu0 0
        %1459 = vmatprep.subr.bf16.mxu0 0
        %1460 = vmatpush1.bf16.xpose.msra.mxu0 0
        %1461 = vmatprep.subr.bf16.mxu0 0
        %1462 = vmatpush1.bf16.xpose.msra.mxu0 0
        %1463 = vmatprep.subr.bf16.mxu0 0
        %1464 = vmatpush1.bf16.xpose.msra.mxu0 0
        %1465 = vmatprep.subr.bf16.mxu0 0
        %1466 = vmatpush1.bf16.xpose.msra.mxu0 0
        %1467 = vmatprep.subr.bf16.mxu0 0
        %1468 = vmatpush1.bf16.xpose.msra.mxu0 0
        %1469 = vmatprep.subr.bf16.mxu0 0
        %1470 = vmatpush1.bf16.xpose.msra.mxu0 0
        %1471 = vmatprep.subr.bf16.mxu0 0
        %1472 = vmatpush1.bf16.xpose.msra.mxu0 0
        %1473 = vmatprep.subr.bf16.mxu0 0
        %1474 = vmatpush1.bf16.xpose.msra.mxu0 0
        %1475 = vmatprep.subr.bf16.mxu0 0
        %1476 = vmatpush1.bf16.xpose.msra.mxu0 0
        %1477 = vmatprep.subr.bf16.mxu0 0
        %1478 = vmatpush1.bf16.xpose.msra.mxu0 0
        %1479 = vmatprep.mubr.bf16.mxu0 0
        %1480 = vmatmul.mubr.bf16.gmra.mrb[0].mxu0 %v1442
        %v1481 = vpop.f32.mrb[0].mxu0
        %v1482 = vadd.f32 0.0, %v1481
        %v1483 = vpop.f32.mrb[0].mxu0
        %v1484 = vpop.f32.mrb[0].mxu0
        %v1485 = vpop.f32.mrb[0].mxu0
        %1486 = vdwg.mxu0
        %v1487 = vsel %vm543, %v1482, -inf
        %1488 = vmax.xlane.f32.xlu0 %v1487
        %v1489 = vpop.xlane.xlu0 %1488
        %v1490 = vsub.f32 %v1482, %v1489
        %v1491 = vmul.f32 %v1490, 1.442695
        %v1492 = vpow.pop %v1491
        %v1493 = vsel %vm543, %v1492, 0.0
        %1494 = vadd.xlane.f32.xlu0 %v1493
        %v1495 = vpop.xlane.xlu0 %1494
        %v1496 = vrcp.pop %v1495
        %v1497 = vmul.f32 %v1492, %v1496
        %v1498 = vpack.c.bf16 %v1497, %v1497
        %1499 = vrot.lane.b32.xlu0 %v1325, 56
        %v1500 = vpop.permute.xlu0 %1499
        %v1502 = vsel %vm543, %v1498, 0
        %v1505 = vsel %vm607, %v1500, 0
        %1507 = vmatprep.subr.bf16.mxu0 0
        %1508 = vmatpush1.bf16.msra.mxu0 %v1505
        %1509 = vmatprep.subr.bf16.mxu0 0
        %1510 = vmatpush1.bf16.msra.mxu0 0
        %1511 = vmatprep.subr.bf16.mxu0 0
        %1512 = vmatpush1.bf16.msra.mxu0 0
        %1513 = vmatprep.subr.bf16.mxu0 0
        %1514 = vmatpush1.bf16.msra.mxu0 0
        %1515 = vmatprep.subr.bf16.mxu0 0
        %1516 = vmatpush1.bf16.msra.mxu0 0
        %1517 = vmatprep.subr.bf16.mxu0 0
        %1518 = vmatpush1.bf16.msra.mxu0 0
        %1519 = vmatprep.subr.bf16.mxu0 0
        %1520 = vmatpush1.bf16.msra.mxu0 0
        %1521 = vmatprep.subr.bf16.mxu0 0
        %1522 = vmatpush1.bf16.msra.mxu0 0
        %1523 = vmatprep.subr.bf16.mxu0 0
        %1524 = vmatpush1.bf16.msra.mxu0 0
        %1525 = vmatprep.subr.bf16.mxu0 0
        %1526 = vmatpush1.bf16.msra.mxu0 0
        %1527 = vmatprep.subr.bf16.mxu0 0
        %1528 = vmatpush1.bf16.msra.mxu0 0
        %1529 = vmatprep.subr.bf16.mxu0 0
        %1530 = vmatpush1.bf16.msra.mxu0 0
        %1531 = vmatprep.subr.bf16.mxu0 0
        %1532 = vmatpush1.bf16.msra.mxu0 0
        %1533 = vmatprep.subr.bf16.mxu0 0
        %1534 = vmatpush1.bf16.msra.mxu0 0
        %1535 = vmatprep.subr.bf16.mxu0 0
        %1536 = vmatpush1.bf16.msra.mxu0 0
        %1537 = vmatprep.subr.bf16.mxu0 0
        %1538 = vmatpush1.bf16.msra.mxu0 0
        %1539 = vmatprep.mubr.bf16.mxu0 0
        %1540 = vmatmul.mubr.bf16.gmra.mrb[0].mxu0 %v1502
        %v1541 = vpop.f32.mrb[0].mxu0
        %v1542 = vadd.f32 0.0, %v1541
        %v1543 = vpop.f32.mrb[0].mxu0
        %v1544 = vpop.f32.mrb[0].mxu0
        %v1545 = vpop.f32.mrb[0].mxu0
        %1546 = vdwg.mxu0
        %v1547 = vpack.c.bf16 %v1542, %v1542
        %1548 = vrot.lane.b32.xlu0 %v1324, 112
        %v1549 = vpop.permute.xlu0 %1548
        %1550 = vrot.lane.b32.xlu0 %v1325, 80
        %v1551 = vpop.permute.xlu0 %1550
        %v1553 = vsel %vm543, %v1549, 0
        %v1556 = vsel %vm543, %v1551, 0
        %1558 = vmatprep.subr.bf16.mxu0 0
        %1559 = vmatpush1.bf16.xpose.msra.mxu0 %v1556
        %1560 = vmatprep.subr.bf16.mxu0 0
        %1561 = vmatpush1.bf16.xpose.msra.mxu0 0
        %1562 = vmatprep.subr.bf16.mxu0 0
        %1563 = vmatpush1.bf16.xpose.msra.mxu0 0
        %1564 = vmatprep.subr.bf16.mxu0 0
        %1565 = vmatpush1.bf16.xpose.msra.mxu0 0
        %1566 = vmatprep.subr.bf16.mxu0 0
        %1567 = vmatpush1.bf16.xpose.msra.mxu0 0
        %1568 = vmatprep.subr.bf16.mxu0 0
        %1569 = vmatpush1.bf16.xpose.msra.mxu0 0
        %1570 = vmatprep.subr.bf16.mxu0 0
        %1571 = vmatpush1.bf16.xpose.msra.mxu0 0
        %1572 = vmatprep.subr.bf16.mxu0 0
        %1573 = vmatpush1.bf16.xpose.msra.mxu0 0
        %1574 = vmatprep.subr.bf16.mxu0 0
        %1575 = vmatpush1.bf16.xpose.msra.mxu0 0
        %1576 = vmatprep.subr.bf16.mxu0 0
        %1577 = vmatpush1.bf16.xpose.msra.mxu0 0
        %1578 = vmatprep.subr.bf16.mxu0 0
        %1579 = vmatpush1.bf16.xpose.msra.mxu0 0
        %1580 = vmatprep.subr.bf16.mxu0 0
        %1581 = vmatpush1.bf16.xpose.msra.mxu0 0
        %1582 = vmatprep.subr.bf16.mxu0 0
        %1583 = vmatpush1.bf16.xpose.msra.mxu0 0
        %1584 = vmatprep.subr.bf16.mxu0 0
        %1585 = vmatpush1.bf16.xpose.msra.mxu0 0
        %1586 = vmatprep.subr.bf16.mxu0 0
        %1587 = vmatpush1.bf16.xpose.msra.mxu0 0
        %1588 = vmatprep.subr.bf16.mxu0 0
        %1589 = vmatpush1.bf16.xpose.msra.mxu0 0
        %1590 = vmatprep.mubr.bf16.mxu0 0
        %1591 = vmatmul.mubr.bf16.gmra.mrb[0].mxu0 %v1553
        %v1592 = vpop.f32.mrb[0].mxu0
        %v1593 = vadd.f32 0.0, %v1592
        %v1594 = vpop.f32.mrb[0].mxu0
        %v1595 = vpop.f32.mrb[0].mxu0
        %v1596 = vpop.f32.mrb[0].mxu0
        %1597 = vdwg.mxu0
        %v1598 = vsel %vm543, %v1593, -inf
        %1599 = vmax.xlane.f32.xlu0 %v1598
        %v1600 = vpop.xlane.xlu0 %1599
        %v1601 = vsub.f32 %v1593, %v1600
        %v1602 = vmul.f32 %v1601, 1.442695
        %v1603 = vpow.pop %v1602
        %v1604 = vsel %vm543, %v1603, 0.0
        %1605 = vadd.xlane.f32.xlu0 %v1604
        %v1606 = vpop.xlane.xlu0 %1605
        %v1607 = vrcp.pop %v1606
        %v1608 = vmul.f32 %v1603, %v1607
        %v1609 = vpack.c.bf16 %v1608, %v1608
        %1610 = vrot.lane.b32.xlu0 %v1325, 48
        %v1611 = vpop.permute.xlu0 %1610
        %v1613 = vsel %vm543, %v1609, 0
        %v1616 = vsel %vm607, %v1611, 0
        %1618 = vmatprep.subr.bf16.mxu0 0
        %1619 = vmatpush1.bf16.msra.mxu0 %v1616
        %1620 = vmatprep.subr.bf16.mxu0 0
        %1621 = vmatpush1.bf16.msra.mxu0 0
        %1622 = vmatprep.subr.bf16.mxu0 0
        %1623 = vmatpush1.bf16.msra.mxu0 0
        %1624 = vmatprep.subr.bf16.mxu0 0
        %1625 = vmatpush1.bf16.msra.mxu0 0
        %1626 = vmatprep.subr.bf16.mxu0 0
        %1627 = vmatpush1.bf16.msra.mxu0 0
        %1628 = vmatprep.subr.bf16.mxu0 0
        %1629 = vmatpush1.bf16.msra.mxu0 0
        %1630 = vmatprep.subr.bf16.mxu0 0
        %1631 = vmatpush1.bf16.msra.mxu0 0
        %1632 = vmatprep.subr.bf16.mxu0 0
        %1633 = vmatpush1.bf16.msra.mxu0 0
        %1634 = vmatprep.subr.bf16.mxu0 0
        %1635 = vmatpush1.bf16.msra.mxu0 0
        %1636 = vmatprep.subr.bf16.mxu0 0
        %1637 = vmatpush1.bf16.msra.mxu0 0
        %1638 = vmatprep.subr.bf16.mxu0 0
        %1639 = vmatpush1.bf16.msra.mxu0 0
        %1640 = vmatprep.subr.bf16.mxu0 0
        %1641 = vmatpush1.bf16.msra.mxu0 0
        %1642 = vmatprep.subr.bf16.mxu0 0
        %1643 = vmatpush1.bf16.msra.mxu0 0
        %1644 = vmatprep.subr.bf16.mxu0 0
        %1645 = vmatpush1.bf16.msra.mxu0 0
        %1646 = vmatprep.subr.bf16.mxu0 0
        %1647 = vmatpush1.bf16.msra.mxu0 0
        %1648 = vmatprep.subr.bf16.mxu0 0
        %1649 = vmatpush1.bf16.msra.mxu0 0
        %1650 = vmatprep.mubr.bf16.mxu0 0
        %1651 = vmatmul.mubr.bf16.gmra.mrb[0].mxu0 %v1613
        %v1652 = vpop.f32.mrb[0].mxu0
        %v1653 = vadd.f32 0.0, %v1652
        %v1654 = vpop.f32.mrb[0].mxu0
        %v1655 = vpop.f32.mrb[0].mxu0
        %v1656 = vpop.f32.mrb[0].mxu0
        %1657 = vdwg.mxu0
        %v1658 = vpack.c.bf16 %v1653, %v1653
        %1659 = vrot.lane.b32.xlu0 %v1324, 104
        %v1660 = vpop.permute.xlu0 %1659
        %1661 = vrot.lane.b32.xlu0 %v1325, 72
        %v1662 = vpop.permute.xlu0 %1661
        %v1664 = vsel %vm543, %v1660, 0
        %v1667 = vsel %vm543, %v1662, 0
        %1669 = vmatprep.subr.bf16.mxu0 0
        %1670 = vmatpush1.bf16.xpose.msra.mxu0 %v1667
        %1671 = vmatprep.subr.bf16.mxu0 0
        %1672 = vmatpush1.bf16.xpose.msra.mxu0 0
        %1673 = vmatprep.subr.bf16.mxu0 0
        %1674 = vmatpush1.bf16.xpose.msra.mxu0 0
        %1675 = vmatprep.subr.bf16.mxu0 0
        %1676 = vmatpush1.bf16.xpose.msra.mxu0 0
        %1677 = vmatprep.subr.bf16.mxu0 0
        %1678 = vmatpush1.bf16.xpose.msra.mxu0 0
        %1679 = vmatprep.subr.bf16.mxu0 0
        %1680 = vmatpush1.bf16.xpose.msra.mxu0 0
        %1681 = vmatprep.subr.bf16.mxu0 0
        %1682 = vmatpush1.bf16.xpose.msra.mxu0 0
        %1683 = vmatprep.subr.bf16.mxu0 0
        %1684 = vmatpush1.bf16.xpose.msra.mxu0 0
        %1685 = vmatprep.subr.bf16.mxu0 0
        %1686 = vmatpush1.bf16.xpose.msra.mxu0 0
        %1687 = vmatprep.subr.bf16.mxu0 0
        %1688 = vmatpush1.bf16.xpose.msra.mxu0 0
        %1689 = vmatprep.subr.bf16.mxu0 0
        %1690 = vmatpush1.bf16.xpose.msra.mxu0 0
        %1691 = vmatprep.subr.bf16.mxu0 0
        %1692 = vmatpush1.bf16.xpose.msra.mxu0 0
        %1693 = vmatprep.subr.bf16.mxu0 0
        %1694 = vmatpush1.bf16.xpose.msra.mxu0 0
        %1695 = vmatprep.subr.bf16.mxu0 0
        %1696 = vmatpush1.bf16.xpose.msra.mxu0 0
        %1697 = vmatprep.subr.bf16.mxu0 0
        %1698 = vmatpush1.bf16.xpose.msra.mxu0 0
        %1699 = vmatprep.subr.bf16.mxu0 0
        %1700 = vmatpush1.bf16.xpose.msra.mxu0 0
        %1701 = vmatprep.mubr.bf16.mxu0 0
        %1702 = vmatmul.mubr.bf16.gmra.mrb[0].mxu0 %v1664
        %v1703 = vpop.f32.mrb[0].mxu0
        %v1704 = vadd.f32 0.0, %v1703
        %v1705 = vpop.f32.mrb[0].mxu0
        %v1706 = vpop.f32.mrb[0].mxu0
        %v1707 = vpop.f32.mrb[0].mxu0
        %1708 = vdwg.mxu0
        %v1709 = vsel %vm543, %v1704, -inf
        %1710 = vmax.xlane.f32.xlu0 %v1709
        %v1711 = vpop.xlane.xlu0 %1710
        %v1712 = vsub.f32 %v1704, %v1711
        %v1713 = vmul.f32 %v1712, 1.442695
        %v1714 = vpow.pop %v1713
        %v1715 = vsel %vm543, %v1714, 0.0
        %1716 = vadd.xlane.f32.xlu0 %v1715
        %v1717 = vpop.xlane.xlu0 %1716
        %v1718 = vrcp.pop %v1717
        %v1719 = vmul.f32 %v1714, %v1718
        %v1720 = vpack.c.bf16 %v1719, %v1719
        %1721 = vrot.lane.b32.xlu0 %v1325, 40
        %v1722 = vpop.permute.xlu0 %1721
        %v1724 = vsel %vm543, %v1720, 0
        %v1727 = vsel %vm607, %v1722, 0
        %1729 = vmatprep.subr.bf16.mxu0 0
        %1730 = vmatpush1.bf16.msra.mxu0 %v1727
        %1731 = vmatprep.subr.bf16.mxu0 0
        %1732 = vmatpush1.bf16.msra.mxu0 0
        %1733 = vmatprep.subr.bf16.mxu0 0
        %1734 = vmatpush1.bf16.msra.mxu0 0
        %1735 = vmatprep.subr.bf16.mxu0 0
        %1736 = vmatpush1.bf16.msra.mxu0 0
        %1737 = vmatprep.subr.bf16.mxu0 0
        %1738 = vmatpush1.bf16.msra.mxu0 0
        %1739 = vmatprep.subr.bf16.mxu0 0
        %1740 = vmatpush1.bf16.msra.mxu0 0
        %1741 = vmatprep.subr.bf16.mxu0 0
        %1742 = vmatpush1.bf16.msra.mxu0 0
        %1743 = vmatprep.subr.bf16.mxu0 0
        %1744 = vmatpush1.bf16.msra.mxu0 0
        %1745 = vmatprep.subr.bf16.mxu0 0
        %1746 = vmatpush1.bf16.msra.mxu0 0
        %1747 = vmatprep.subr.bf16.mxu0 0
        %1748 = vmatpush1.bf16.msra.mxu0 0
        %1749 = vmatprep.subr.bf16.mxu0 0
        %1750 = vmatpush1.bf16.msra.mxu0 0
        %1751 = vmatprep.subr.bf16.mxu0 0
        %1752 = vmatpush1.bf16.msra.mxu0 0
        %1753 = vmatprep.subr.bf16.mxu0 0
        %1754 = vmatpush1.bf16.msra.mxu0 0
        %1755 = vmatprep.subr.bf16.mxu0 0
        %1756 = vmatpush1.bf16.msra.mxu0 0
        %1757 = vmatprep.subr.bf16.mxu0 0
        %1758 = vmatpush1.bf16.msra.mxu0 0
        %1759 = vmatprep.subr.bf16.mxu0 0
        %1760 = vmatpush1.bf16.msra.mxu0 0
        %1761 = vmatprep.mubr.bf16.mxu0 0
        %1762 = vmatmul.mubr.bf16.gmra.mrb[0].mxu0 %v1724
        %v1763 = vpop.f32.mrb[0].mxu0
        %v1764 = vadd.f32 0.0, %v1763
        %v1765 = vpop.f32.mrb[0].mxu0
        %v1766 = vpop.f32.mrb[0].mxu0
        %v1767 = vpop.f32.mrb[0].mxu0
        %1768 = vdwg.mxu0
        %v1769 = vpack.c.bf16 %v1764, %v1764
        %1771 = vrot.lane.b32.xlu0 %v1547, 8
        %v1772 = vpop.permute.xlu0 %1771
        %1774 = vrot.lane.b32.xlu0 %v1658, 16
        %v1775 = vpop.permute.xlu0 %1774
        %1777 = vrot.lane.b32.xlu0 %v1769, 24
        %v1778 = vpop.permute.xlu0 %1777
        %v1781 = vsel %vm543, %v1435, %v1772
        %v1783 = vsel %vm998, %v1781, %v1775
        %v1785 = vsel %vm1001, %v1783, %v1778
        %v1786 = vsel %vm493, %v1785, 0
        %1788 = vmatprep.subr.bf16.mxu0 0
        %1789 = vmatpush1.bf16.msra.mxu0 %v1018
        %1790 = vmatprep.subr.bf16.mxu0 0
        %1791 = vmatpush1.bf16.msra.mxu0 %v1019
        %1792 = vmatprep.subr.bf16.mxu0 0
        %1793 = vmatpush1.bf16.msra.mxu0 0
        %1794 = vmatprep.subr.bf16.mxu0 0
        %1795 = vmatpush1.bf16.msra.mxu0 0
        %1796 = vmatprep.subr.bf16.mxu0 0
        %1797 = vmatpush1.bf16.msra.mxu0 0
        %1798 = vmatprep.subr.bf16.mxu0 0
        %1799 = vmatpush1.bf16.msra.mxu0 0
        %1800 = vmatprep.subr.bf16.mxu0 0
        %1801 = vmatpush1.bf16.msra.mxu0 0
        %1802 = vmatprep.subr.bf16.mxu0 0
        %1803 = vmatpush1.bf16.msra.mxu0 0
        %1804 = vmatprep.subr.bf16.mxu0 0
        %1805 = vmatpush1.bf16.msra.mxu0 0
        %1806 = vmatprep.subr.bf16.mxu0 0
        %1807 = vmatpush1.bf16.msra.mxu0 0
        %1808 = vmatprep.subr.bf16.mxu0 0
        %1809 = vmatpush1.bf16.msra.mxu0 0
        %1810 = vmatprep.subr.bf16.mxu0 0
        %1811 = vmatpush1.bf16.msra.mxu0 0
        %1812 = vmatprep.subr.bf16.mxu0 0
        %1813 = vmatpush1.bf16.msra.mxu0 0
        %1814 = vmatprep.subr.bf16.mxu0 0
        %1815 = vmatpush1.bf16.msra.mxu0 0
        %1816 = vmatprep.subr.bf16.mxu0 0
        %1817 = vmatpush1.bf16.msra.mxu0 0
        %1818 = vmatprep.subr.bf16.mxu0 0
        %1819 = vmatpush1.bf16.msra.mxu0 0
        %1820 = vmatprep.mubr.bf16.mxu0 0
        %1821 = vmatmul.mubr.bf16.gmra.mrb[0].mxu0 %v1786
        %v1822 = vpop.f32.mrb[0].mxu0
        %v1823 = vadd.f32 %v1008, %v1822
        %v1824 = vpop.f32.mrb[0].mxu0
        %v1825 = vpop.f32.mrb[0].mxu0
        %v1826 = vpop.f32.mrb[0].mxu0
        %1827 = vdwg.mxu0
        %v1828 = vadd.f32 %v1823, %v1278
        %v1829 = vsel %vm493, %v1828, 0.0
        %1830 = vadd.xlane.f32.xlu0 %v1829
        %v1831 = vpop.xlane.xlu0 %1830
        %v1832 = vmul.f32 %v1831, %v1068
        %v1833 = vsub.f32 %v1828, %v1832
        %v1834 = vmul.f32 %v1833, %v1833
        %v1835 = vsel %vm493, %v1834, 0.0
        %1836 = vadd.xlane.f32.xlu0 %v1835
        %v1837 = vpop.xlane.xlu0 %1836
        %v1838 = vmul.f32 %v1837, %v1068
        %v1839 = vadd.f32 %v1838, 1e-05
        %v1840 = vrsqrt.pop %v1839
        %v1841 = vmul.f32 %v1833, %v1840
        %v1842 = vmul.f32 %v1841, %v1269
        %v1843 = vadd.f32 %v1842, %v1276
        %1844 = vst.msk [vmem:[%s431] sm:$0xff] %vm493, %v1843
        %s1845 = sand.u32 %s313, 1
        %s1846 = scalar_lea.sflag [#allocation3], %s1845
        %s1847 = sand.u32 %s313, 1
        %s1848 = smul.addr %s1847, 8
        %s1849 = scalar_lea.vmem [#allocation2], %s1848
        // Predicated region
        $region73: #{encode_forward.1} parent=71 // pred_check
          %p1850 = pneg %p323
        $region74: #{encode_forward.1} parent=71 // pred_check_branch
          %1852 = sbr.rel (%p1850) target = $region76
        $region75: #{encode_forward.1} parent=71 // pred_region
          %s1854 = ssub.s32 128, 128
          %1855 = vsyncadd %s1846, %s1854
          %s1856 = smul.addr %s27, 128
          %s1857 = scalar_lea.hbm %s13, %s1856
          %s1859 = sshll.u32 %s1849, 4
          %s1860 = int_to_ptr.vmem [resolvable:$true] %s1859
          %1862 = dma.vmem_to_hbm [thread:$0]  %s1860, 128, %s1857, %s1846
        $region76: #{encode_forward.1} parent=71 // pred_fallthru
          _
      $region72: #{encode_forward.1} parent=5 // pred_fallthru
        _
      %p1863 = scmp.le.s32.totalorder 2, %s22
      // Predicated region
      $region77: #{encode_forward.1} parent=5 // pred_check
        %p1864 = pneg %p1863
      $region78: #{encode_forward.1} parent=5 // pred_check_branch
        %1866 = sbr.rel (%p1864) target = $region80
      $region79: #{encode_forward.1} parent=5 // pred_region
        %s1867 = ssub.s32 %s22, 2
        // Predicated region
        $region81: #{encode_forward.1} parent=79 // pred_check
          %p1868 = pneg %p329
        $region82: #{encode_forward.1} parent=79 // pred_check_branch
          %1870 = sbr.rel (%p1868) target = $region84
        $region83: #{encode_forward.1} parent=79 // pred_region
          %s1871 = sand.u32 %s314, 1
          %s1872 = scalar_lea.sflag [#allocation3], %s1871
          %s1873 = sand.u32 %s314, 1
          %s1874 = smul.addr %s1873, 8
          %s1875 = scalar_lea.vmem [#allocation2], %s1874
          %1876 = dma.done %s1872, 128
        $region84: #{encode_forward.1} parent=79 // pred_fallthru
          _
      $region80: #{encode_forward.1} parent=5 // pred_fallthru
        _
    $region6: #{encode_forward.1} parent=1 // loop_footer
      %s26 = sadd.s32 1, %s22
    $region7: #{encode_forward.1} parent=1 // loop_footer_branch
      %21 = sbr.rel target = $region3
    $region8: #{encode_forward.1} parent=1 // loop_exit
      _
    %1877 = vsyncpa [#allocation3], 1
    %s1878 = scalar_lea.sflag [#allocation3], 1
    %1879 = vsyncpa %s1878, 1

</llo_original>
